<compile_context>
chip_gen: v7x
topology: tpu7x:2x2x1
jax: 0.10.0
libtpu: 0.0.40
codegen_flags: <defaults>
</compile_context>

<pallas_src>
import functools

import jax
import jax.numpy as jnp
import numpy as np
from jax.experimental import pallas as pl
from jax.experimental.pallas import tpu as pltpu


def _depth_head_kernel(x_ref, m1_ref, w1_ref, b1_ref, w2_ref, b2_ref, out_ref,
                       *, wp2, d1):
    # x_ref  : (nb, Cin, xf_len) flat, zero-padded, channel-first images
    # m1_ref : (1, m_mid)        interior mask for conv1-output lanes
    # w1_ref : (9, Chid, Cin)    conv1 weights, tap-major (t = ky*3 + kx)
    # b1_ref : (Chid, 1)
    # w2_ref : (9, Chid)         conv2 weights, tap-major (Cout = 1)
    # b2_ref : (1, 1)
    # out_ref: (nb, m_out)       tanh(conv2(relu(conv1(x)))), flat layout
    nb = x_ref.shape[0]
    m_mid = m1_ref.shape[1]
    m_out = out_ref.shape[1]
    offs = tuple(ky * wp2 + kx + d1 for ky in range(3) for kx in range(3))

    mask = m1_ref[...]          # (1, m_mid)
    b1 = b1_ref[...]            # (Chid, 1)
    b2 = b2_ref[...]            # (1, 1)
    w2 = w2_ref[...]            # (9, Chid)

    for b in range(nb):         # static, fully unrolled (nb is small)
        # ---- conv1: 9 per-tap accumulating MXU matmuls, no im2col staging ----
        y1 = None
        for t in range(9):
            xs = x_ref[b, :, pl.ds(offs[t], m_mid)]            # (Cin, m_mid)
            p = jnp.dot(w1_ref[t], xs, preferred_element_type=jnp.float32)
            y1 = p if y1 is None else y1 + p
        # bias + ReLU + interior mask: y1 becomes exactly the zero-padded flat
        # conv2 input (padding ring / halo / tail lanes forced to 0).
        y1 = jnp.maximum(y1 + b1, 0.0) * mask                  # (Chid, m_mid)

        # ---- conv2 (Cout=1): one (9,Chid)@(Chid,m_mid) matmul reads y1 once,
        # then 9 lane-shifted single-row adds (no (9*Chid, M) staging) ----
        z = jnp.dot(w2, y1, preferred_element_type=jnp.float32)  # (9, m_mid)
        y2 = None
        for t in range(9):
            row = z[t:t + 1, offs[t]:offs[t] + m_out]          # (1, m_out)
            y2 = row if y2 is None else y2 + row
        out_ref[b:b + 1, :] = jnp.tanh(y2 + b2)                # lane-dense store


def depth_head(x_nchw, w1, b1, w2, b2, *, block_n=8):
    """x_nchw: (N, Cin, H, W) f32; weights in PyTorch Conv2d layout (OIHW, O).
       Returns (N, 1, H, W) f32, matching DepthHead.forward (act_fn=tanh)."""
    n, cin, h, w = x_nchw.shape
    chid = w1.shape[0]
    hp2, wp2 = h + 2, w + 2
    L = hp2 * wp2

    # ---- flat-layout geometry (all lane counts 128-aligned) ----
    pimg = pl.cdiv(L, 128) * 128            # per-image lane length (conv2 out)
    margin = pl.cdiv(wp2 + 1, 64) * 64      # halo, rounded so m_mid/xf_len align
    d1 = margin - wp2 - 1                   # constant extra tap offset
    m_out = pimg
    m_mid = pimg + 2 * margin               # conv1 output lanes (with halo)
    xf_len = pimg + 4 * margin              # conv1 input lanes

    # ---- grid sizing: >= 2 steps when N >= 2 (dual-TC), VMEM-bounded nb ----
    nb = max(1, min(block_n, (n + 1) // 2))
    in_budget = 6 * 2**20                   # per-step input-block budget (bytes)
    nb = max(1, min(nb, in_budget // max(1, cin * xf_len * 4)))
    g = pl.cdiv(n, nb)
    n_pad = g * nb

    # ---- wrapper-side layout plumbing: zero pads only, NO transpose ----
    x = x_nchw.astype(jnp.float32)
    if n_pad != n:
        x = jnp.pad(x, ((0, n_pad - n), (0, 0), (0, 0), (0, 0)))
    xpad = jnp.pad(x, ((0, 0), (0, 0), (1, 1), (1, 1)))          # (Np,Cin,Hp2,Wp2)
    xflat = xpad.reshape(n_pad, cin, L)
    xf = jnp.pad(xflat, ((0, 0), (0, 0), (2 * margin, xf_len - 2 * margin - L)))

    # Interior mask for conv1-output lanes (host-built, tiny).
    q = np.arange(m_mid)
    f = q - margin
    ii, jj = f // wp2, f % wp2
    interior = ((f >= 0) & (f < L) &
                (ii >= 1) & (ii <= h) & (jj >= 1) & (jj <= w))
    m1 = jnp.asarray(interior.astype(np.float32)).reshape(1, m_mid)

    # Weights: tap-major layouts matching the kernel's per-tap matmuls.
    w1k = jnp.transpose(w1, (2, 3, 0, 1)).reshape(9, chid, cin).astype(jnp.float32)
    w2k = jnp.transpose(w2[0], (1, 2, 0)).reshape(9, chid).astype(jnp.float32)
    b1k = b1.reshape(chid, 1).astype(jnp.float32)
    b2k = b2.reshape(1, 1).astype(jnp.float32)

    kernel = functools.partial(_depth_head_kernel, wp2=wp2, d1=d1)

    flops = n_pad * (2 * 9 * cin * chid * m_mid + 2 * 9 * chid * m_mid
                     + 9 * m_out)
    bytes_accessed = 4 * (n_pad * cin * xf_len + n_pad * m_out
                          + 9 * chid * (cin + 1) + m_mid)
    cost = pl.CostEstimate(flops=flops, transcendentals=n_pad * m_out,
                           bytes_accessed=bytes_accessed)

    step_bytes = 4 * (2 * nb * (cin * xf_len + m_out)        # dbl-buffered I/O
                      + chid * m_mid + 16 * m_mid            # y1, z
                      + 9 * chid * cin + 9 * chid + m_mid)   # weights, mask
    vmem_limit = int(min(56 * 2**20, max(32 * 2**20, 2 * step_bytes)))

    out = pl.pallas_call(
        kernel,
        out_shape=jax.ShapeDtypeStruct((g, nb, m_out), jnp.float32),
        grid_spec=pltpu.PrefetchScalarGridSpec(
            num_scalar_prefetch=0,
            grid=(g,),
            in_specs=[
                pl.BlockSpec((nb, cin, xf_len), lambda i: (i, 0, 0)),
                pl.BlockSpec((1, m_mid), lambda i: (0, 0)),
                pl.BlockSpec((9, chid, cin), lambda i: (0, 0, 0)),
                pl.BlockSpec((chid, 1), lambda i: (0, 0)),
                pl.BlockSpec((9, chid), lambda i: (0, 0)),
                pl.BlockSpec((1, 1), lambda i: (0, 0)),
            ],
            out_specs=pl.BlockSpec((None, nb, m_out), lambda i: (i, 0, 0)),
        ),
        compiler_params=pltpu.CompilerParams(
            dimension_semantics=("parallel",),
            vmem_limit_bytes=vmem_limit),
        cost_estimate=cost,
    )(xf, m1, w1k, b1k, w2k, b2k)

    # Strip flat-layout padding and restore (N, 1, H, W).
    out = out.reshape(n_pad, m_out)[:n, :L]
    out = out.reshape(n, hp2, wp2)[:, 1:1 + h, 1:1 + w]
    return out[:, None, :, :]


def _ref_depth_head(x, w1, b1, w2, b2):
    """Pure-JAX reference matching PyTorch nn.Conv2d semantics (NCHW/OIHW)."""
    dn = ("NCHW", "OIHW", "NCHW")
    hmid = jax.lax.conv_general_dilated(x, w1, (1, 1), ((1, 1), (1, 1)),
                                        dimension_numbers=dn)
    hmid = jax.nn.relu(hmid + b1[None, :, None, None])
    o = jax.lax.conv_general_dilated(hmid, w2, (1, 1), ((1, 1), (1, 1)),
                                     dimension_numbers=dn)
    return jnp.tanh(o + b2[None, :, None, None])


if __name__ == "__main__":
    # Small shapes consistent with DepthHead(input_dim, hidden_dim).
    N, Cin, Chid, H, W = 2, 8, 16, 16, 16

    key = jax.random.PRNGKey(0)
    kx, kw1, kb1, kw2, kb2 = jax.random.split(key, 5)

    x = jax.random.normal(kx, (N, Cin, H, W), dtype=jnp.float32)
    # Conv2d parameter shapes: (out, in, 3, 3) + (out,)
    w1 = 0.1 * jax.random.normal(kw1, (Chid, Cin, 3, 3), dtype=jnp.float32)
    b1 = 0.1 * jax.random.normal(kb1, (Chid,), dtype=jnp.float32)
    w2 = 0.1 * jax.random.normal(kw2, (1, Chid, 3, 3), dtype=jnp.float32)
    b2 = 0.1 * jax.random.normal(kb2, (1,), dtype=jnp.float32)

    out = jax.block_until_ready(depth_head(x, w1, b1, w2, b2))
    ref = jax.block_until_ready(_ref_depth_head(x, w1, b1, w2, b2))

    assert out.shape == (N, 1, H, W)
    np.testing.assert_allclose(np.asarray(out), np.asarray(ref),
                               rtol=1e-3, atol=1e-3)

    # Second geometry: N not divisible by nb, multi-image blocks, W with
    # pimg > hp2*wp2 tail — exercises padding / mask / halo logic.
    N2, H2, W2 = 3, 12, 30
    kx2 = jax.random.split(key, 6)[5]
    x2 = jax.random.normal(kx2, (N2, Cin, H2, W2), dtype=jnp.float32)
    out2 = jax.block_until_ready(depth_head(x2, w1, b1, w2, b2))
    ref2 = jax.block_until_ready(_ref_depth_head(x2, w1, b1, w2, b2))
    assert out2.shape == (N2, 1, H2, W2)
    np.testing.assert_allclose(np.asarray(out2), np.asarray(ref2),
                               rtol=1e-3, atol=1e-3)

    print("KERNEL_OK")
</pallas_src>

<mosaic_0001>
module attributes {stable_mosaic.version = 11 : i64} {
  func.func @_depth_head_kernel(%arg0: i32, %arg1: memref<1x8x640xf32, #tpu.memory_space<vmem>>, %arg2: memref<1x512xf32, #tpu.memory_space<vmem>>, %arg3: memref<9x16x8xf32, #tpu.memory_space<vmem>>, %arg4: memref<16x1xf32, #tpu.memory_space<vmem>>, %arg5: memref<9x16xf32, #tpu.memory_space<vmem>>, %arg6: memref<1x1xf32, #tpu.memory_space<vmem>>, %arg7: memref<1x1x384xf32, #tpu.memory_space<vmem>>) attributes {dimension_semantics = [#tpu.dimension_semantics<parallel>], iteration_bounds = array<i64: 2>, scalar_prefetch = 0 : i64, scratch_operands = 0 : i64, tpu.core_type = #tpu.core_type<tc>, window_params = [{transform_indices = @transform_0, window_bounds = array<i64: 1, 8, 640>}, {pipeline_mode = #tpu.pipeline_mode<synchronous>, transform_indices = @transform_1, window_bounds = array<i64: 1, 512>}, {pipeline_mode = #tpu.pipeline_mode<synchronous>, transform_indices = @transform_2, window_bounds = array<i64: 9, 16, 8>}, {pipeline_mode = #tpu.pipeline_mode<synchronous>, transform_indices = @transform_3, window_bounds = array<i64: 16, 1>}, {pipeline_mode = #tpu.pipeline_mode<synchronous>, transform_indices = @transform_4, window_bounds = array<i64: 9, 16>}, {pipeline_mode = #tpu.pipeline_mode<synchronous>, transform_indices = @transform_5, window_bounds = array<i64: 1, 1>}, {transform_indices = @transform_6, window_bounds = array<i64: 1, 1, 384>}]} {
    %c0 = arith.constant 0 : index
    %c0_0 = arith.constant 0 : index
    %0 = vector.load %arg2[%c0, %c0_0] : memref<1x512xf32, #tpu.memory_space<vmem>>, vector<1x512xf32>
    %c0_1 = arith.constant 0 : index
    %c0_2 = arith.constant 0 : index
    %1 = vector.load %arg4[%c0_1, %c0_2] : memref<16x1xf32, #tpu.memory_space<vmem>>, vector<16x1xf32>
    %c0_3 = arith.constant 0 : index
    %c0_4 = arith.constant 0 : index
    %2 = vector.load %arg6[%c0_3, %c0_4] : memref<1x1xf32, #tpu.memory_space<vmem>>, vector<1x1xf32>
    %c0_5 = arith.constant 0 : index
    %c0_6 = arith.constant 0 : index
    %3 = vector.load %arg5[%c0_5, %c0_6] : memref<9x16xf32, #tpu.memory_space<vmem>>, vector<9x16xf32>
    %c0_7 = arith.constant 0 : index
    %c0_8 = arith.constant 0 : index
    %c45 = arith.constant 45 : index
    %4 = vector.load %arg1[%c0_7, %c0_8, %c45] : memref<1x8x640xf32, #tpu.memory_space<vmem>>, vector<1x8x512xf32>
    %5 = vector.shape_cast %4 : vector<1x8x512xf32> to vector<8x512xf32>
    %c0_9 = arith.constant 0 : index
    %c0_10 = arith.constant 0 : index
    %c0_11 = arith.constant 0 : index
    %6 = vector.load %arg3[%c0_9, %c0_10, %c0_11] : memref<9x16x8xf32, #tpu.memory_space<vmem>>, vector<1x16x8xf32>
    %7 = vector.shape_cast %6 : vector<1x16x8xf32> to vector<16x8xf32>
    %cst = arith.constant dense<0.000000e+00> : vector<16x512xf32>
    %8 = tpu.matmul %7, %5, %cst {dimension_numbers = #tpu.dot_dimension_numbers<[1], [0], [0], [1], [0, 0, 1, 1], [], []>} : vector<16x8xf32>, vector<8x512xf32>, vector<16x512xf32> -> vector<16x512xf32>
    %c0_12 = arith.constant 0 : index
    %c0_13 = arith.constant 0 : index
    %c46 = arith.constant 46 : index
    %9 = vector.load %arg1[%c0_12, %c0_13, %c46] : memref<1x8x640xf32, #tpu.memory_space<vmem>>, vector<1x8x512xf32>
    %10 = vector.shape_cast %9 : vector<1x8x512xf32> to vector<8x512xf32>
    %c1 = arith.constant 1 : index
    %c0_14 = arith.constant 0 : index
    %c0_15 = arith.constant 0 : index
    %11 = vector.load %arg3[%c1, %c0_14, %c0_15] : memref<9x16x8xf32, #tpu.memory_space<vmem>>, vector<1x16x8xf32>
    %12 = vector.shape_cast %11 : vector<1x16x8xf32> to vector<16x8xf32>
    %cst_16 = arith.constant dense<0.000000e+00> : vector<16x512xf32>
    %13 = tpu.matmul %12, %10, %cst_16 {dimension_numbers = #tpu.dot_dimension_numbers<[1], [0], [0], [1], [0, 0, 1, 1], [], []>} : vector<16x8xf32>, vector<8x512xf32>, vector<16x512xf32> -> vector<16x512xf32>
    %14 = arith.addf %8, %13 : vector<16x512xf32>
    %c0_17 = arith.constant 0 : index
    %c0_18 = arith.constant 0 : index
    %c47 = arith.constant 47 : index
    %15 = vector.load %arg1[%c0_17, %c0_18, %c47] : memref<1x8x640xf32, #tpu.memory_space<vmem>>, vector<1x8x512xf32>
    %16 = vector.shape_cast %15 : vector<1x8x512xf32> to vector<8x512xf32>
    %c2 = arith.constant 2 : index
    %c0_19 = arith.constant 0 : index
    %c0_20 = arith.constant 0 : index
    %17 = vector.load %arg3[%c2, %c0_19, %c0_20] : memref<9x16x8xf32, #tpu.memory_space<vmem>>, vector<1x16x8xf32>
    %18 = vector.shape_cast %17 : vector<1x16x8xf32> to vector<16x8xf32>
    %cst_21 = arith.constant dense<0.000000e+00> : vector<16x512xf32>
    %19 = tpu.matmul %18, %16, %cst_21 {dimension_numbers = #tpu.dot_dimension_numbers<[1], [0], [0], [1], [0, 0, 1, 1], [], []>} : vector<16x8xf32>, vector<8x512xf32>, vector<16x512xf32> -> vector<16x512xf32>
    %20 = arith.addf %14, %19 : vector<16x512xf32>
    %c0_22 = arith.constant 0 : index
    %c0_23 = arith.constant 0 : index
    %c63 = arith.constant 63 : index
    %21 = vector.load %arg1[%c0_22, %c0_23, %c63] : memref<1x8x640xf32, #tpu.memory_space<vmem>>, vector<1x8x512xf32>
    %22 = vector.shape_cast %21 : vector<1x8x512xf32> to vector<8x512xf32>
    %c3 = arith.constant 3 : index
    %c0_24 = arith.constant 0 : index
    %c0_25 = arith.constant 0 : index
    %23 = vector.load %arg3[%c3, %c0_24, %c0_25] : memref<9x16x8xf32, #tpu.memory_space<vmem>>, vector<1x16x8xf32>
    %24 = vector.shape_cast %23 : vector<1x16x8xf32> to vector<16x8xf32>
    %cst_26 = arith.constant dense<0.000000e+00> : vector<16x512xf32>
    %25 = tpu.matmul %24, %22, %cst_26 {dimension_numbers = #tpu.dot_dimension_numbers<[1], [0], [0], [1], [0, 0, 1, 1], [], []>} : vector<16x8xf32>, vector<8x512xf32>, vector<16x512xf32> -> vector<16x512xf32>
    %26 = arith.addf %20, %25 : vector<16x512xf32>
    %c0_27 = arith.constant 0 : index
    %c0_28 = arith.constant 0 : index
    %c64 = arith.constant 64 : index
    %27 = vector.load %arg1[%c0_27, %c0_28, %c64] : memref<1x8x640xf32, #tpu.memory_space<vmem>>, vector<1x8x512xf32>
    %28 = vector.shape_cast %27 : vector<1x8x512xf32> to vector<8x512xf32>
    %c4 = arith.constant 4 : index
    %c0_29 = arith.constant 0 : index
    %c0_30 = arith.constant 0 : index
    %29 = vector.load %arg3[%c4, %c0_29, %c0_30] : memref<9x16x8xf32, #tpu.memory_space<vmem>>, vector<1x16x8xf32>
    %30 = vector.shape_cast %29 : vector<1x16x8xf32> to vector<16x8xf32>
    %cst_31 = arith.constant dense<0.000000e+00> : vector<16x512xf32>
    %31 = tpu.matmul %30, %28, %cst_31 {dimension_numbers = #tpu.dot_dimension_numbers<[1], [0], [0], [1], [0, 0, 1, 1], [], []>} : vector<16x8xf32>, vector<8x512xf32>, vector<16x512xf32> -> vector<16x512xf32>
    %32 = arith.addf %26, %31 : vector<16x512xf32>
    %c0_32 = arith.constant 0 : index
    %c0_33 = arith.constant 0 : index
    %c65 = arith.constant 65 : index
    %33 = vector.load %arg1[%c0_32, %c0_33, %c65] : memref<1x8x640xf32, #tpu.memory_space<vmem>>, vector<1x8x512xf32>
    %34 = vector.shape_cast %33 : vector<1x8x512xf32> to vector<8x512xf32>
    %c5 = arith.constant 5 : index
    %c0_34 = arith.constant 0 : index
    %c0_35 = arith.constant 0 : index
    %35 = vector.load %arg3[%c5, %c0_34, %c0_35] : memref<9x16x8xf32, #tpu.memory_space<vmem>>, vector<1x16x8xf32>
    %36 = vector.shape_cast %35 : vector<1x16x8xf32> to vector<16x8xf32>
    %cst_36 = arith.constant dense<0.000000e+00> : vector<16x512xf32>
    %37 = tpu.matmul %36, %34, %cst_36 {dimension_numbers = #tpu.dot_dimension_numbers<[1], [0], [0], [1], [0, 0, 1, 1], [], []>} : vector<16x8xf32>, vector<8x512xf32>, vector<16x512xf32> -> vector<16x512xf32>
    %38 = arith.addf %32, %37 : vector<16x512xf32>
    %c0_37 = arith.constant 0 : index
    %c0_38 = arith.constant 0 : index
    %c81 = arith.constant 81 : index
    %39 = vector.load %arg1[%c0_37, %c0_38, %c81] : memref<1x8x640xf32, #tpu.memory_space<vmem>>, vector<1x8x512xf32>
    %40 = vector.shape_cast %39 : vector<1x8x512xf32> to vector<8x512xf32>
    %c6 = arith.constant 6 : index
    %c0_39 = arith.constant 0 : index
    %c0_40 = arith.constant 0 : index
    %41 = vector.load %arg3[%c6, %c0_39, %c0_40] : memref<9x16x8xf32, #tpu.memory_space<vmem>>, vector<1x16x8xf32>
    %42 = vector.shape_cast %41 : vector<1x16x8xf32> to vector<16x8xf32>
    %cst_41 = arith.constant dense<0.000000e+00> : vector<16x512xf32>
    %43 = tpu.matmul %42, %40, %cst_41 {dimension_numbers = #tpu.dot_dimension_numbers<[1], [0], [0], [1], [0, 0, 1, 1], [], []>} : vector<16x8xf32>, vector<8x512xf32>, vector<16x512xf32> -> vector<16x512xf32>
    %44 = arith.addf %38, %43 : vector<16x512xf32>
    %c0_42 = arith.constant 0 : index
    %c0_43 = arith.constant 0 : index
    %c82 = arith.constant 82 : index
    %45 = vector.load %arg1[%c0_42, %c0_43, %c82] : memref<1x8x640xf32, #tpu.memory_space<vmem>>, vector<1x8x512xf32>
    %46 = vector.shape_cast %45 : vector<1x8x512xf32> to vector<8x512xf32>
    %c7 = arith.constant 7 : index
    %c0_44 = arith.constant 0 : index
    %c0_45 = arith.constant 0 : index
    %47 = vector.load %arg3[%c7, %c0_44, %c0_45] : memref<9x16x8xf32, #tpu.memory_space<vmem>>, vector<1x16x8xf32>
    %48 = vector.shape_cast %47 : vector<1x16x8xf32> to vector<16x8xf32>
    %cst_46 = arith.constant dense<0.000000e+00> : vector<16x512xf32>
    %49 = tpu.matmul %48, %46, %cst_46 {dimension_numbers = #tpu.dot_dimension_numbers<[1], [0], [0], [1], [0, 0, 1, 1], [], []>} : vector<16x8xf32>, vector<8x512xf32>, vector<16x512xf32> -> vector<16x512xf32>
    %50 = arith.addf %44, %49 : vector<16x512xf32>
    %c0_47 = arith.constant 0 : index
    %c0_48 = arith.constant 0 : index
    %c83 = arith.constant 83 : index
    %51 = vector.load %arg1[%c0_47, %c0_48, %c83] : memref<1x8x640xf32, #tpu.memory_space<vmem>>, vector<1x8x512xf32>
    %52 = vector.shape_cast %51 : vector<1x8x512xf32> to vector<8x512xf32>
    %c8 = arith.constant 8 : index
    %c0_49 = arith.constant 0 : index
    %c0_50 = arith.constant 0 : index
    %53 = vector.load %arg3[%c8, %c0_49, %c0_50] : memref<9x16x8xf32, #tpu.memory_space<vmem>>, vector<1x16x8xf32>
    %54 = vector.shape_cast %53 : vector<1x16x8xf32> to vector<16x8xf32>
    %cst_51 = arith.constant dense<0.000000e+00> : vector<16x512xf32>
    %55 = tpu.matmul %54, %52, %cst_51 {dimension_numbers = #tpu.dot_dimension_numbers<[1], [0], [0], [1], [0, 0, 1, 1], [], []>} : vector<16x8xf32>, vector<8x512xf32>, vector<16x512xf32> -> vector<16x512xf32>
    %56 = arith.addf %50, %55 : vector<16x512xf32>
    %57 = vector.broadcast %1 : vector<16x1xf32> to vector<16x512xf32>
    %58 = arith.addf %56, %57 : vector<16x512xf32>
    %cst_52 = arith.constant 0.000000e+00 : f32
    %59 = vector.broadcast %cst_52 : f32 to vector<16x512xf32>
    %60 = arith.maximumf %58, %59 : vector<16x512xf32>
    %61 = vector.broadcast %0 : vector<1x512xf32> to vector<16x512xf32>
    %62 = arith.mulf %60, %61 : vector<16x512xf32>
    %cst_53 = arith.constant dense<0.000000e+00> : vector<9x512xf32>
    %63 = tpu.matmul %3, %62, %cst_53 {dimension_numbers = #tpu.dot_dimension_numbers<[1], [0], [0], [1], [0, 0, 1, 1], [], []>} : vector<9x16xf32>, vector<16x512xf32>, vector<9x512xf32> -> vector<9x512xf32>
    %64 = vector.extract_strided_slice %63 {offsets = [0, 45], sizes = [1, 384], strides = [1, 1]} : vector<9x512xf32> to vector<1x384xf32>
    %65 = vector.extract_strided_slice %63 {offsets = [1, 46], sizes = [1, 384], strides = [1, 1]} : vector<9x512xf32> to vector<1x384xf32>
    %66 = arith.addf %64, %65 : vector<1x384xf32>
    %67 = vector.extract_strided_slice %63 {offsets = [2, 47], sizes = [1, 384], strides = [1, 1]} : vector<9x512xf32> to vector<1x384xf32>
    %68 = arith.addf %66, %67 : vector<1x384xf32>
    %69 = vector.extract_strided_slice %63 {offsets = [3, 63], sizes = [1, 384], strides = [1, 1]} : vector<9x512xf32> to vector<1x384xf32>
    %70 = arith.addf %68, %69 : vector<1x384xf32>
    %71 = vector.extract_strided_slice %63 {offsets = [4, 64], sizes = [1, 384], strides = [1, 1]} : vector<9x512xf32> to vector<1x384xf32>
    %72 = arith.addf %70, %71 : vector<1x384xf32>
    %73 = vector.extract_strided_slice %63 {offsets = [5, 65], sizes = [1, 384], strides = [1, 1]} : vector<9x512xf32> to vector<1x384xf32>
    %74 = arith.addf %72, %73 : vector<1x384xf32>
    %75 = vector.extract_strided_slice %63 {offsets = [6, 81], sizes = [1, 384], strides = [1, 1]} : vector<9x512xf32> to vector<1x384xf32>
    %76 = arith.addf %74, %75 : vector<1x384xf32>
    %77 = vector.extract_strided_slice %63 {offsets = [7, 82], sizes = [1, 384], strides = [1, 1]} : vector<9x512xf32> to vector<1x384xf32>
    %78 = arith.addf %76, %77 : vector<1x384xf32>
    %79 = vector.extract_strided_slice %63 {offsets = [8, 83], sizes = [1, 384], strides = [1, 1]} : vector<9x512xf32> to vector<1x384xf32>
    %80 = arith.addf %78, %79 : vector<1x384xf32>
    %81 = vector.broadcast %2 : vector<1x1xf32> to vector<1x384xf32>
    %82 = arith.addf %80, %81 : vector<1x384xf32>
    %83 = math.tanh %82 : vector<1x384xf32>
    %c0_54 = arith.constant 0 : index
    %c0_55 = arith.constant 0 : index
    %c0_56 = arith.constant 0 : index
    %84 = vector.load %arg7[%c0_54, %c0_55, %c0_56] : memref<1x1x384xf32, #tpu.memory_space<vmem>>, vector<1x1x384xf32>
    %85 = vector.shape_cast %84 : vector<1x1x384xf32> to vector<1x384xf32>
    %86 = vector.shape_cast %83 : vector<1x384xf32> to vector<1x1x384xf32>
    tpu.vector_store %arg7[%c0_54, %c0_55, %c0_56], %86 {strides = array<i32>} : memref<1x1x384xf32, #tpu.memory_space<vmem>>, vector<1x1x384xf32>,
    return
  }
  func.func @transform_0(%arg0: i32) -> (i32, i32, i32) {
    %c0_i32 = arith.constant 0 : i32
    %c0_i32_0 = arith.constant 0 : i32
    %c0_i32_1 = arith.constant 0 : i32
    return %arg0, %c0_i32, %c0_i32_0 : i32, i32, i32
  }
  func.func @transform_1(%arg0: i32) -> (i32, i32) {
    %c0_i32 = arith.constant 0 : i32
    %c0_i32_0 = arith.constant 0 : i32
    %c0_i32_1 = arith.constant 0 : i32
    return %c0_i32, %c0_i32_0 : i32, i32
  }
  func.func @transform_2(%arg0: i32) -> (i32, i32, i32) {
    %c0_i32 = arith.constant 0 : i32
    %c0_i32_0 = arith.constant 0 : i32
    %c0_i32_1 = arith.constant 0 : i32
    %c0_i32_2 = arith.constant 0 : i32
    return %c0_i32, %c0_i32_0, %c0_i32_1 : i32, i32, i32
  }
  func.func @transform_3(%arg0: i32) -> (i32, i32) {
    %c0_i32 = arith.constant 0 : i32
    %c0_i32_0 = arith.constant 0 : i32
    %c0_i32_1 = arith.constant 0 : i32
    return %c0_i32, %c0_i32_0 : i32, i32
  }
  func.func @transform_4(%arg0: i32) -> (i32, i32) {
    %c0_i32 = arith.constant 0 : i32
    %c0_i32_0 = arith.constant 0 : i32
    %c0_i32_1 = arith.constant 0 : i32
    return %c0_i32, %c0_i32_0 : i32, i32
  }
  func.func @transform_5(%arg0: i32) -> (i32, i32) {
    %c0_i32 = arith.constant 0 : i32
    %c0_i32_0 = arith.constant 0 : i32
    %c0_i32_1 = arith.constant 0 : i32
    return %c0_i32, %c0_i32_0 : i32, i32
  }
  func.func @transform_6(%arg0: i32) -> (i32, i32, i32) {
    %c0_i32 = arith.constant 0 : i32
    %c0_i32_0 = arith.constant 0 : i32
    %c0_i32_1 = arith.constant 0 : i32
    return %arg0, %c0_i32, %c0_i32_0 : i32, i32, i32
  }
}

</mosaic_0001>

<llo_original>
// kernel: tpu_custom_call.1
$region0: #{tpu_custom_call.1}
  #allocation0 [shape = 'u32[]', space=smem, size = 0x4, offset = 0x4, fixed_abs, tag = 'smem constant byte address 0x4 - core index']
  #allocation1 [shape = 'u32[144,128]{1,0:T(1,128)}', space=vmem, size = 0x12000, scoped, tag = 'internal scratch']
  #allocation2 [shape = 'f32[1,1]{1,0:T(1,128)S(1)}', space=vmem, size = 0x200, scoped, tag = 'scoped memory for tpu_custom_call.1']
  %s0 = inlined_call_operand.vmem [shape: f32[2,8,640], index: 0, kind: input, shape index: {}]
  %s1 = inlined_call_operand.vmem [shape: f32[1,512], index: 1, kind: input, shape index: {}]
  %s2 = inlined_call_operand.vmem [shape: f32[9,16,8], index: 2, kind: input, shape index: {}]
  %s3 = inlined_call_operand.vmem [shape: f32[16,1], index: 3, kind: input, shape index: {}]
  %s4 = inlined_call_operand.vmem [shape: f32[9,16], index: 4, kind: input, shape index: {}]
  %s5 = inlined_call_operand.<no memory space> [shape: f32[1,1], index: 5, kind: input, shape index: {}]
  %s6 = inlined_call_operand.hbm [shape: f32[2,1,384], index: 6, kind: output, shape index: {}]
  %s7 = sld [smem:[#allocation0]]
  $region57: #{tpu_custom_call.1} parent=0
    _
  %s9 = ssub.s32 1, %s7
  %s10 = scalar_select 0, %s9, %s7
  %v11 = vstv %s5
  %12 = vst [vmem:[#allocation2] sm:$0x1] %v11
  $region1: #{tpu_custom_call.1} parent=0
    #allocation3 [shape = 'u8[3072]{0}', space=vmem, size = 0xc00, scoped, tag = 'output window, operand 0']
    #allocation4 [shape = 's32[2]{0}', space=sflag, size = 0x8, scoped, tag = 'scoped memory for tpu_custom_call.1']
    %13 = vsyncpa [#allocation4], 0
    %s14 = scalar_lea.sflag [#allocation4], 1
    %15 = vsyncpa %s14, 0
    loop: start=0, step=1, limit=4
    $region2: #{tpu_custom_call.1} parent=1 // loop_pre_header
      _
    $region3: #{tpu_custom_call.1} parent=1 // loop_header
      %s17 = sphi 0, %s21
      %p18 = scmp.ge.s32.totalorder %s17, 4
      %s27 = sphi 0, %s29
      %s30 = sphi 0, %s27
      %s31 = sphi 0, %s30
      %s47 = sphi 0, %s31
      %s51 = sphi 0, %s51
      %s53 = sphi 0, %s51
      %s54 = sphi 0, %s53
      %s68 = sphi 0, %s54
      %s72 = sphi 0, %s72
      %s74 = sphi 0, %s72
      %s75 = sphi 0, %s74
      %s89 = sphi 0, %s75
      %s93 = sphi 0, %s93
      %s95 = sphi 0, %s93
      %s96 = sphi 0, %s95
      %s110 = sphi 0, %s96
      %s114 = sphi 0, %s114
      %s116 = sphi 0, %s114
      %s117 = sphi 0, %s116
      %s131 = sphi 0, %s117
      %s135 = sphi 0, %s135
      %s137 = sphi 0, %s135
      %s138 = sphi 0, %s137
      %s152 = sphi 0, %s138
      %s158 = sphi 0, %s160
      %s161 = sphi 0, %s158
      %s162 = sphi 0, %s161
      %s178 = sphi 0, %s162
    $region4: #{tpu_custom_call.1} parent=1 // loop_header_branch
      %20 = sbr.rel (%p18) target = $region8
    $region5: #{tpu_custom_call.1} parent=1 // loop_body
      %s22 = ssub.s32 %s17, 1
      %s23 = ssub.s32 %s17, 2
      %s24 = sadd.s32 %s17, 1
      %s25 = ssub.s32 %s17, %s24
      %p26 = scmp.eq.s32.totalorder %s25, 0
      %s28 = sadd.s32 %s27, 1
      %s29 = scalar_select %p26, %s27, %s28
      %p32 = pneg %p26
      %p33 = scmp.eq.s32.totalorder %s17, 1
      %p34 = por %p32, %p33
      %p35 = scmp.ne.s32.totalorder %s27, %s30
      %p36 = scmp.eq.s32.totalorder %s17, 0
      %p37 = por %p35, %p36
      %p38 = scmp.ne.s32.totalorder %s27, %s30
      %p39 = scmp.eq.s32.totalorder %s22, 1
      %p40 = por %p38, %p39
      %p41 = scmp.ne.s32.totalorder %s30, %s31
      %p42 = scmp.eq.s32.totalorder %s22, 0
      %p43 = por %p41, %p42
      %p44 = scmp.ne.s32.totalorder %s30, %s31
      %p45 = scmp.eq.s32.totalorder %s23, 1
      %p46 = por %p44, %p45
      %p48 = scmp.ne.s32.totalorder %s31, %s47
      %p49 = scmp.eq.s32.totalorder %s23, 0
      %p50 = por %p48, %p49
      %s52 = sadd.s32 %s51, 1
      %p55 = scmp.eq.s32.totalorder %s17, 1
      %p56 = scmp.ne.s32.totalorder %s51, %s53
      %p57 = scmp.eq.s32.totalorder %s17, 0
      %p58 = por %p56, %p57
      %p59 = scmp.ne.s32.totalorder %s51, %s53
      %p60 = scmp.eq.s32.totalorder %s22, 1
      %p61 = por %p59, %p60
      %p62 = scmp.ne.s32.totalorder %s53, %s54
      %p63 = scmp.eq.s32.totalorder %s22, 0
      %p64 = por %p62, %p63
      %p65 = scmp.ne.s32.totalorder %s53, %s54
      %p66 = scmp.eq.s32.totalorder %s23, 1
      %p67 = por %p65, %p66
      %p69 = scmp.ne.s32.totalorder %s54, %s68
      %p70 = scmp.eq.s32.totalorder %s23, 0
      %p71 = por %p69, %p70
      %s73 = sadd.s32 %s72, 1
      %p76 = scmp.eq.s32.totalorder %s17, 1
      %p77 = scmp.ne.s32.totalorder %s72, %s74
      %p78 = scmp.eq.s32.totalorder %s17, 0
      %p79 = por %p77, %p78
      %p80 = scmp.ne.s32.totalorder %s72, %s74
      %p81 = scmp.eq.s32.totalorder %s22, 1
      %p82 = por %p80, %p81
      %p83 = scmp.ne.s32.totalorder %s74, %s75
      %p84 = scmp.eq.s32.totalorder %s22, 0
      %p85 = por %p83, %p84
      %p86 = scmp.ne.s32.totalorder %s74, %s75
      %p87 = scmp.eq.s32.totalorder %s23, 1
      %p88 = por %p86, %p87
      %p90 = scmp.ne.s32.totalorder %s75, %s89
      %p91 = scmp.eq.s32.totalorder %s23, 0
      %p92 = por %p90, %p91
      %s94 = sadd.s32 %s93, 1
      %p97 = scmp.eq.s32.totalorder %s17, 1
      %p98 = scmp.ne.s32.totalorder %s93, %s95
      %p99 = scmp.eq.s32.totalorder %s17, 0
      %p100 = por %p98, %p99
      %p101 = scmp.ne.s32.totalorder %s93, %s95
      %p102 = scmp.eq.s32.totalorder %s22, 1
      %p103 = por %p101, %p102
      %p104 = scmp.ne.s32.totalorder %s95, %s96
      %p105 = scmp.eq.s32.totalorder %s22, 0
      %p106 = por %p104, %p105
      %p107 = scmp.ne.s32.totalorder %s95, %s96
      %p108 = scmp.eq.s32.totalorder %s23, 1
      %p109 = por %p107, %p108
      %p111 = scmp.ne.s32.totalorder %s96, %s110
      %p112 = scmp.eq.s32.totalorder %s23, 0
      %p113 = por %p111, %p112
      %s115 = sadd.s32 %s114, 1
      %p118 = scmp.eq.s32.totalorder %s17, 1
      %p119 = scmp.ne.s32.totalorder %s114, %s116
      %p120 = scmp.eq.s32.totalorder %s17, 0
      %p121 = por %p119, %p120
      %p122 = scmp.ne.s32.totalorder %s114, %s116
      %p123 = scmp.eq.s32.totalorder %s22, 1
      %p124 = por %p122, %p123
      %p125 = scmp.ne.s32.totalorder %s116, %s117
      %p126 = scmp.eq.s32.totalorder %s22, 0
      %p127 = por %p125, %p126
      %p128 = scmp.ne.s32.totalorder %s116, %s117
      %p129 = scmp.eq.s32.totalorder %s23, 1
      %p130 = por %p128, %p129
      %p132 = scmp.ne.s32.totalorder %s117, %s131
      %p133 = scmp.eq.s32.totalorder %s23, 0
      %p134 = por %p132, %p133
      %s136 = sadd.s32 %s135, 1
      %p139 = scmp.eq.s32.totalorder %s17, 1
      %p140 = scmp.ne.s32.totalorder %s135, %s137
      %p141 = scmp.eq.s32.totalorder %s17, 0
      %p142 = por %p140, %p141
      %p143 = scmp.ne.s32.totalorder %s135, %s137
      %p144 = scmp.eq.s32.totalorder %s22, 1
      %p145 = por %p143, %p144
      %p146 = scmp.ne.s32.totalorder %s137, %s138
      %p147 = scmp.eq.s32.totalorder %s22, 0
      %p148 = por %p146, %p147
      %p149 = scmp.ne.s32.totalorder %s137, %s138
      %p150 = scmp.eq.s32.totalorder %s23, 1
      %p151 = por %p149, %p150
      %p153 = scmp.ne.s32.totalorder %s138, %s152
      %p154 = scmp.eq.s32.totalorder %s23, 0
      %p155 = por %p153, %p154
      %s156 = ssub.s32 %s17, %s24
      %p157 = scmp.eq.s32.totalorder %s156, 0
      %s159 = sadd.s32 %s158, 1
      %s160 = scalar_select %p157, %s158, %s159
      %p163 = pneg %p157
      %p164 = scmp.eq.s32.totalorder %s17, 1
      %p165 = por %p163, %p164
      %p166 = scmp.ne.s32.totalorder %s158, %s161
      %p167 = scmp.eq.s32.totalorder %s17, 0
      %p168 = por %p166, %p167
      %p169 = scmp.ne.s32.totalorder %s158, %s161
      %p170 = scmp.eq.s32.totalorder %s22, 1
      %p171 = por %p169, %p170
      %p172 = scmp.ne.s32.totalorder %s161, %s162
      %p173 = scmp.eq.s32.totalorder %s22, 0
      %p174 = por %p172, %p173
      %p175 = scmp.ne.s32.totalorder %s161, %s162
      %p176 = scmp.eq.s32.totalorder %s23, 1
      %p177 = por %p175, %p176
      %p179 = scmp.ne.s32.totalorder %s162, %s178
      %p180 = scmp.eq.s32.totalorder %s23, 0
      %p181 = por %p179, %p180
      %p182 = scmp.le.s32.totalorder 1, %s17
      %p183 = scmp.lt.s32.totalorder %s17, 3
      %p184 = pnand %p182, %p183
      %p185 = pneg %p184
      // Predicated region
      $region9: #{tpu_custom_call.1} parent=5 // pred_check
        _
      $region10: #{tpu_custom_call.1} parent=5 // pred_check_branch
        %187 = sbr.rel (%p184) target = $region12
      $region11: #{tpu_custom_call.1} parent=5 // pred_region
        %s188 = ssub.s32 %s17, 1
        // Predicated region
        $region13: #{tpu_custom_call.1} parent=11 // pred_check
          %p189 = pneg %p64
        $region14: #{tpu_custom_call.1} parent=11 // pred_check_branch
          %191 = sbr.rel (%p189) target = $region16
        $region15: #{tpu_custom_call.1} parent=11 // pred_region
          _
        $region16: #{tpu_custom_call.1} parent=11 // pred_fallthru
          _
        // Predicated region
        $region17: #{tpu_custom_call.1} parent=11 // pred_check
          %p192 = pneg %p85
        $region18: #{tpu_custom_call.1} parent=11 // pred_check_branch
          %194 = sbr.rel (%p192) target = $region20
        $region19: #{tpu_custom_call.1} parent=11 // pred_region
          _
        $region20: #{tpu_custom_call.1} parent=11 // pred_fallthru
          _
        // Predicated region
        $region21: #{tpu_custom_call.1} parent=11 // pred_check
          %p195 = pneg %p106
        $region22: #{tpu_custom_call.1} parent=11 // pred_check_branch
          %197 = sbr.rel (%p195) target = $region24
        $region23: #{tpu_custom_call.1} parent=11 // pred_region
          _
        $region24: #{tpu_custom_call.1} parent=11 // pred_fallthru
          _
        // Predicated region
        $region25: #{tpu_custom_call.1} parent=11 // pred_check
          %p198 = pneg %p127
        $region26: #{tpu_custom_call.1} parent=11 // pred_check_branch
          %200 = sbr.rel (%p198) target = $region28
        $region27: #{tpu_custom_call.1} parent=11 // pred_region
          _
        $region28: #{tpu_custom_call.1} parent=11 // pred_fallthru
          _
        // Predicated region
        $region29: #{tpu_custom_call.1} parent=11 // pred_check
          %p201 = pneg %p148
        $region30: #{tpu_custom_call.1} parent=11 // pred_check_branch
          %203 = sbr.rel (%p201) target = $region32
        $region31: #{tpu_custom_call.1} parent=11 // pred_region
          _
        $region32: #{tpu_custom_call.1} parent=11 // pred_fallthru
          _
      $region12: #{tpu_custom_call.1} parent=5 // pred_fallthru
        _
      %p204 = scmp.lt.s32.totalorder %s17, 2
      // Predicated region
      $region33: #{tpu_custom_call.1} parent=5 // pred_check
        %p205 = pneg %p204
      $region34: #{tpu_custom_call.1} parent=5 // pred_check_branch
        %207 = sbr.rel (%p205) target = $region36
      $region35: #{tpu_custom_call.1} parent=5 // pred_region
        // Predicated region
        $region37: #{tpu_custom_call.1} parent=35 // pred_check
          %p208 = pneg %p37
        $region38: #{tpu_custom_call.1} parent=35 // pred_check_branch
          %210 = sbr.rel (%p208) target = $region40
        $region39: #{tpu_custom_call.1} parent=35 // pred_region
          %p211 = scmp.lt.s32.totalorder %s17, 1
          %s212 = scalar_select %p211, %s17, 1
          %s213 = smul.addr %s212, 5
          %s214 = smul.addr %s213, 8
          %s215 = scalar_lea.vmem %s0, %s214
        $region40: #{tpu_custom_call.1} parent=35 // pred_fallthru
          _
      $region36: #{tpu_custom_call.1} parent=5 // pred_fallthru
        _
      %p216 = scmp.le.s32.totalorder 1, %s17
      %p217 = scmp.lt.s32.totalorder %s17, 3
      %p218 = pnand %p216, %p217
      %p219 = pneg %p218
      // Predicated region
      $region41: #{tpu_custom_call.1} parent=5 // pred_check
        _
      $region42: #{tpu_custom_call.1} parent=5 // pred_check_branch
        %221 = sbr.rel (%p218) target = $region44
      $region43: #{tpu_custom_call.1} parent=5 // pred_region
        %s222 = ssub.s32 %s17, 1
        %p223 = scmp.lt.s32.totalorder %s22, 1
        %s224 = scalar_select %p223, %s22, 1
        %s225 = smul.addr %s224, 5
        %s226 = smul.addr %s225, 8
        %s227 = scalar_lea.vmem %s0, %s226
        %p228 = pneg %p43
        %p229 = pneg %p40
        %p230 = pneg %p64
        %p231 = pneg %p61
        %p232 = pneg %p85
        %p233 = pneg %p82
        %p234 = pneg %p106
        %p235 = pneg %p103
        %p236 = pneg %p127
        %p237 = pneg %p124
        %p238 = pneg %p148
        %p239 = pneg %p145
        %p240 = pneg %p174
        %p241 = pneg %p171
        %s242 = sand.u32 %s161, 1
        %s243 = scalar_lea.sflag [#allocation4], %s242
        %s244 = sand.u32 %s161, 1
        %s245 = smul.addr %s244, 3
        %s246 = scalar_lea.vmem [#allocation3], %s245
        %p247 = scmp.lt.s32.totalorder %s22, 1
        %s248 = scalar_select %p247, %s22, 1
        %s249 = smul.addr %s248, 5
        %s250 = smul.addr %s249, 8
        %s251 = scalar_lea.vmem %s0, %s250
        %v252 = vld [vmem:[%s1] sm:$0xf]
        %v253 = vld [vmem:[%s3] sm:$0xff]
        %v254 = vld [vmem:[%s3 + $0x8] sm:$0xff]
        %v255 = vld [vmem:[#allocation2] sm:$0x1]
        %v256 = vld [vmem:[%s4] sm:$0xff]
        %v257 = vld [vmem:[%s4 + $0x8] sm:$0x1]
        %v258 = vld [vmem:[%s251] sm:$0xff]
        %v259 = vld [vmem:[%s251 + $0x8] sm:$0xff]
        %v260 = vld [vmem:[%s251 + $0x10] sm:$0xff]
        %v261 = vld [vmem:[%s251 + $0x18] sm:$0xff]
        %v262 = vld [vmem:[%s251 + $0x20] sm:$0xff]
        %v263 = vld [vmem:[%s2] sm:$0xff]
        %v264 = vld [vmem:[%s2 + $0x8] sm:$0xff]
        %s265 = scalar_lea.vmem %s2, 16
        %v266 = vld [vmem:[%s265] sm:$0xff]
        %v267 = vld [vmem:[%s265 + $0x8] sm:$0xff]
        %273 = vrot.lane.b32.xlu0 %v258, 82
        %v274 = vpop.permute.xlu0 %273
        %275 = vrot.lane.b32.xlu0 %v259, 82
        %v276 = vpop.permute.xlu0 %275
        %277 = vrot.lane.b32.xlu0 %v260, 82
        %v278 = vpop.permute.xlu0 %277
        %279 = vrot.lane.b32.xlu0 %v261, 82
        %v280 = vpop.permute.xlu0 %279
        %281 = vrot.lane.b32.xlu0 %v262, 82
        %v282 = vpop.permute.xlu0 %281
        %vm283 = vcmask 670720
        %v284 = vsel %vm283, %v274, %v276
        %v285 = vsel %vm283, %v276, %v278
        %v286 = vsel %vm283, %v278, %v280
        %v287 = vsel %vm283, %v280, %v282
        %vm292 = vcmask 64512
        %v294 = vsel %vm292, %v266, 0
        %v297 = vsel %vm292, %v267, 0
        %299 = vmatprep.subr.mxu0 %v285
        %300 = vmatpush1.msra.mxu0 %v284
        %301 = vmatprep.subr.mxu0 0.0
        %302 = vmatpush1.msra.mxu0 0.0
        %303 = vmatprep.subr.mxu0 0.0
        %304 = vmatpush1.msra.mxu0 0.0
        %305 = vmatprep.subr.mxu0 0.0
        %306 = vmatpush1.msra.mxu0 0.0
        %307 = vmatprep.subr.mxu0 0.0
        %308 = vmatpush1.msra.mxu0 0.0
        %309 = vmatprep.subr.mxu0 0.0
        %310 = vmatpush1.msra.mxu0 0.0
        %311 = vmatprep.subr.mxu0 0.0
        %312 = vmatpush1.msra.mxu0 0.0
        %313 = vmatprep.subr.mxu0 0.0
        %314 = vmatpush1.msra.mxu0 0.0
        %315 = vmatprep.subr.mxu0 0.0
        %316 = vmatpush1.msra.mxu0 0.0
        %317 = vmatprep.subr.mxu0 0.0
        %318 = vmatpush1.msra.mxu0 0.0
        %319 = vmatprep.subr.mxu0 0.0
        %320 = vmatpush1.msra.mxu0 0.0
        %321 = vmatprep.subr.mxu0 0.0
        %322 = vmatpush1.msra.mxu0 0.0
        %323 = vmatprep.subr.mxu0 0.0
        %324 = vmatpush1.msra.mxu0 0.0
        %325 = vmatprep.subr.mxu0 0.0
        %326 = vmatpush1.msra.mxu0 0.0
        %327 = vmatprep.subr.mxu0 0.0
        %328 = vmatpush1.msra.mxu0 0.0
        %329 = vmatprep.subr.mxu0 0.0
        %330 = vmatpush1.msra.mxu0 0.0
        %331 = vmatprep.subr.mxu0 0.0
        %332 = vmatpush1.msra.mxu0 0.0
        %333 = vmatprep.subr.mxu0 0.0
        %334 = vmatpush1.msra.mxu0 0.0
        %335 = vmatprep.subr.mxu0 0.0
        %336 = vmatpush1.msra.mxu0 0.0
        %337 = vmatprep.subr.mxu0 0.0
        %338 = vmatpush1.msra.mxu0 0.0
        %339 = vmatprep.subr.mxu0 0.0
        %340 = vmatpush1.msra.mxu0 0.0
        %341 = vmatprep.subr.mxu0 0.0
        %342 = vmatpush1.msra.mxu0 0.0
        %343 = vmatprep.subr.mxu0 0.0
        %344 = vmatpush1.msra.mxu0 0.0
        %345 = vmatprep.subr.mxu0 0.0
        %346 = vmatpush1.msra.mxu0 0.0
        %347 = vmatprep.subr.mxu0 0.0
        %348 = vmatpush1.msra.mxu0 0.0
        %349 = vmatprep.subr.mxu0 0.0
        %350 = vmatpush1.msra.mxu0 0.0
        %351 = vmatprep.subr.mxu0 0.0
        %352 = vmatpush1.msra.mxu0 0.0
        %353 = vmatprep.subr.mxu0 0.0
        %354 = vmatpush1.msra.mxu0 0.0
        %355 = vmatprep.subr.mxu0 0.0
        %356 = vmatpush1.msra.mxu0 0.0
        %357 = vmatprep.subr.mxu0 0.0
        %358 = vmatpush1.msra.mxu0 0.0
        %359 = vmatprep.subr.mxu0 0.0
        %360 = vmatpush1.msra.mxu0 0.0
        %361 = vmatprep.subr.mxu0 0.0
        %362 = vmatpush1.msra.mxu0 0.0
        %363 = vmatprep.mubr.f32.mxu0 0.0
        %364 = vmatmul.mubr.f32.gmra.mrb[0].mxu0 %v294
        %v365 = vpop.f32.mrb[0].mxu0
        %v366 = vadd.f32 0.0, %v365
        %v367 = vpop.f32.mrb[0].mxu0
        %v368 = vadd.f32 0.0, %v367
        %369 = vmatprep.mubr.f32.mxu0 0.0
        %370 = vmatmul.mubr.f32.gmra.mrb[0].mxu0 %v297
        %v371 = vpop.f32.mrb[0].mxu0
        %v372 = vadd.f32 0.0, %v371
        %v373 = vpop.f32.mrb[0].mxu0
        %v374 = vadd.f32 0.0, %v373
        %375 = vdwg.mxu0
        %376 = vmatprep.subr.mxu0 %v287
        %377 = vmatpush1.msra.mxu0 %v286
        %378 = vmatprep.subr.mxu0 0.0
        %379 = vmatpush1.msra.mxu0 0.0
        %380 = vmatprep.subr.mxu0 0.0
        %381 = vmatpush1.msra.mxu0 0.0
        %382 = vmatprep.subr.mxu0 0.0
        %383 = vmatpush1.msra.mxu0 0.0
        %384 = vmatprep.subr.mxu0 0.0
        %385 = vmatpush1.msra.mxu0 0.0
        %386 = vmatprep.subr.mxu0 0.0
        %387 = vmatpush1.msra.mxu0 0.0
        %388 = vmatprep.subr.mxu0 0.0
        %389 = vmatpush1.msra.mxu0 0.0
        %390 = vmatprep.subr.mxu0 0.0
        %391 = vmatpush1.msra.mxu0 0.0
        %392 = vmatprep.subr.mxu0 0.0
        %393 = vmatpush1.msra.mxu0 0.0
        %394 = vmatprep.subr.mxu0 0.0
        %395 = vmatpush1.msra.mxu0 0.0
        %396 = vmatprep.subr.mxu0 0.0
        %397 = vmatpush1.msra.mxu0 0.0
        %398 = vmatprep.subr.mxu0 0.0
        %399 = vmatpush1.msra.mxu0 0.0
        %400 = vmatprep.subr.mxu0 0.0
        %401 = vmatpush1.msra.mxu0 0.0
        %402 = vmatprep.subr.mxu0 0.0
        %403 = vmatpush1.msra.mxu0 0.0
        %404 = vmatprep.subr.mxu0 0.0
        %405 = vmatpush1.msra.mxu0 0.0
        %406 = vmatprep.subr.mxu0 0.0
        %407 = vmatpush1.msra.mxu0 0.0
        %408 = vmatprep.subr.mxu0 0.0
        %409 = vmatpush1.msra.mxu0 0.0
        %410 = vmatprep.subr.mxu0 0.0
        %411 = vmatpush1.msra.mxu0 0.0
        %412 = vmatprep.subr.mxu0 0.0
        %413 = vmatpush1.msra.mxu0 0.0
        %414 = vmatprep.subr.mxu0 0.0
        %415 = vmatpush1.msra.mxu0 0.0
        %416 = vmatprep.subr.mxu0 0.0
        %417 = vmatpush1.msra.mxu0 0.0
        %418 = vmatprep.subr.mxu0 0.0
        %419 = vmatpush1.msra.mxu0 0.0
        %420 = vmatprep.subr.mxu0 0.0
        %421 = vmatpush1.msra.mxu0 0.0
        %422 = vmatprep.subr.mxu0 0.0
        %423 = vmatpush1.msra.mxu0 0.0
        %424 = vmatprep.subr.mxu0 0.0
        %425 = vmatpush1.msra.mxu0 0.0
        %426 = vmatprep.subr.mxu0 0.0
        %427 = vmatpush1.msra.mxu0 0.0
        %428 = vmatprep.subr.mxu0 0.0
        %429 = vmatpush1.msra.mxu0 0.0
        %430 = vmatprep.subr.mxu0 0.0
        %431 = vmatpush1.msra.mxu0 0.0
        %432 = vmatprep.subr.mxu0 0.0
        %433 = vmatpush1.msra.mxu0 0.0
        %434 = vmatprep.subr.mxu0 0.0
        %435 = vmatpush1.msra.mxu0 0.0
        %436 = vmatprep.subr.mxu0 0.0
        %437 = vmatpush1.msra.mxu0 0.0
        %438 = vmatprep.subr.mxu0 0.0
        %439 = vmatpush1.msra.mxu0 0.0
        %440 = vmatprep.mubr.f32.mxu0 0.0
        %441 = vmatmul.mubr.f32.gmra.mrb[0].mxu0 %v294
        %v442 = vpop.f32.mrb[0].mxu0
        %v443 = vadd.f32 0.0, %v442
        %v444 = vpop.f32.mrb[0].mxu0
        %v445 = vadd.f32 0.0, %v444
        %446 = vmatprep.mubr.f32.mxu0 0.0
        %447 = vmatmul.mubr.f32.gmra.mrb[0].mxu0 %v297
        %v448 = vpop.f32.mrb[0].mxu0
        %v449 = vadd.f32 0.0, %v448
        %v450 = vpop.f32.mrb[0].mxu0
        %v451 = vadd.f32 0.0, %v450
        %452 = vdwg.mxu0
        %453 = vrot.lane.b32.xlu0 %v258, 83
        %v454 = vpop.permute.xlu0 %453
        %455 = vrot.lane.b32.xlu0 %v259, 83
        %v456 = vpop.permute.xlu0 %455
        %457 = vrot.lane.b32.xlu0 %v260, 83
        %v458 = vpop.permute.xlu0 %457
        %459 = vrot.lane.b32.xlu0 %v261, 83
        %v460 = vpop.permute.xlu0 %459
        %461 = vrot.lane.b32.xlu0 %v262, 83
        %v462 = vpop.permute.xlu0 %461
        %vm463 = vcmask 678912
        %v464 = vsel %vm463, %v454, %v456
        %v465 = vsel %vm463, %v456, %v458
        %v466 = vsel %vm463, %v458, %v460
        %v467 = vsel %vm463, %v460, %v462
        %v473 = vsel %vm292, %v263, 0
        %v476 = vsel %vm292, %v264, 0
        %478 = vmatprep.subr.mxu0 %v465
        %479 = vmatpush1.msra.mxu0 %v464
        %480 = vmatprep.subr.mxu0 0.0
        %481 = vmatpush1.msra.mxu0 0.0
        %482 = vmatprep.subr.mxu0 0.0
        %483 = vmatpush1.msra.mxu0 0.0
        %484 = vmatprep.subr.mxu0 0.0
        %485 = vmatpush1.msra.mxu0 0.0
        %486 = vmatprep.subr.mxu0 0.0
        %487 = vmatpush1.msra.mxu0 0.0
        %488 = vmatprep.subr.mxu0 0.0
        %489 = vmatpush1.msra.mxu0 0.0
        %490 = vmatprep.subr.mxu0 0.0
        %491 = vmatpush1.msra.mxu0 0.0
        %492 = vmatprep.subr.mxu0 0.0
        %493 = vmatpush1.msra.mxu0 0.0
        %494 = vmatprep.subr.mxu0 0.0
        %495 = vmatpush1.msra.mxu0 0.0
        %496 = vmatprep.subr.mxu0 0.0
        %497 = vmatpush1.msra.mxu0 0.0
        %498 = vmatprep.subr.mxu0 0.0
        %499 = vmatpush1.msra.mxu0 0.0
        %500 = vmatprep.subr.mxu0 0.0
        %501 = vmatpush1.msra.mxu0 0.0
        %502 = vmatprep.subr.mxu0 0.0
        %503 = vmatpush1.msra.mxu0 0.0
        %504 = vmatprep.subr.mxu0 0.0
        %505 = vmatpush1.msra.mxu0 0.0
        %506 = vmatprep.subr.mxu0 0.0
        %507 = vmatpush1.msra.mxu0 0.0
        %508 = vmatprep.subr.mxu0 0.0
        %509 = vmatpush1.msra.mxu0 0.0
        %510 = vmatprep.subr.mxu0 0.0
        %511 = vmatpush1.msra.mxu0 0.0
        %512 = vmatprep.subr.mxu0 0.0
        %513 = vmatpush1.msra.mxu0 0.0
        %514 = vmatprep.subr.mxu0 0.0
        %515 = vmatpush1.msra.mxu0 0.0
        %516 = vmatprep.subr.mxu0 0.0
        %517 = vmatpush1.msra.mxu0 0.0
        %518 = vmatprep.subr.mxu0 0.0
        %519 = vmatpush1.msra.mxu0 0.0
        %520 = vmatprep.subr.mxu0 0.0
        %521 = vmatpush1.msra.mxu0 0.0
        %522 = vmatprep.subr.mxu0 0.0
        %523 = vmatpush1.msra.mxu0 0.0
        %524 = vmatprep.subr.mxu0 0.0
        %525 = vmatpush1.msra.mxu0 0.0
        %526 = vmatprep.subr.mxu0 0.0
        %527 = vmatpush1.msra.mxu0 0.0
        %528 = vmatprep.subr.mxu0 0.0
        %529 = vmatpush1.msra.mxu0 0.0
        %530 = vmatprep.subr.mxu0 0.0
        %531 = vmatpush1.msra.mxu0 0.0
        %532 = vmatprep.subr.mxu0 0.0
        %533 = vmatpush1.msra.mxu0 0.0
        %534 = vmatprep.subr.mxu0 0.0
        %535 = vmatpush1.msra.mxu0 0.0
        %536 = vmatprep.subr.mxu0 0.0
        %537 = vmatpush1.msra.mxu0 0.0
        %538 = vmatprep.subr.mxu0 0.0
        %539 = vmatpush1.msra.mxu0 0.0
        %540 = vmatprep.subr.mxu0 0.0
        %541 = vmatpush1.msra.mxu0 0.0
        %542 = vmatprep.mubr.f32.mxu0 0.0
        %543 = vmatmul.mubr.f32.gmra.mrb[0].mxu0 %v473
        %v544 = vpop.f32.mrb[0].mxu0
        %v545 = vadd.f32 %v366, %v544
        %v546 = vpop.f32.mrb[0].mxu0
        %v547 = vadd.f32 %v368, %v546
        %548 = vmatprep.mubr.f32.mxu0 0.0
        %549 = vmatmul.mubr.f32.gmra.mrb[0].mxu0 %v476
        %v550 = vpop.f32.mrb[0].mxu0
        %v551 = vadd.f32 %v372, %v550
        %v552 = vpop.f32.mrb[0].mxu0
        %v553 = vadd.f32 %v374, %v552
        %554 = vdwg.mxu0
        %555 = vmatprep.subr.mxu0 %v467
        %556 = vmatpush1.msra.mxu0 %v466
        %557 = vmatprep.subr.mxu0 0.0
        %558 = vmatpush1.msra.mxu0 0.0
        %559 = vmatprep.subr.mxu0 0.0
        %560 = vmatpush1.msra.mxu0 0.0
        %561 = vmatprep.subr.mxu0 0.0
        %562 = vmatpush1.msra.mxu0 0.0
        %563 = vmatprep.subr.mxu0 0.0
        %564 = vmatpush1.msra.mxu0 0.0
        %565 = vmatprep.subr.mxu0 0.0
        %566 = vmatpush1.msra.mxu0 0.0
        %567 = vmatprep.subr.mxu0 0.0
        %568 = vmatpush1.msra.mxu0 0.0
        %569 = vmatprep.subr.mxu0 0.0
        %570 = vmatpush1.msra.mxu0 0.0
        %571 = vmatprep.subr.mxu0 0.0
        %572 = vmatpush1.msra.mxu0 0.0
        %573 = vmatprep.subr.mxu0 0.0
        %574 = vmatpush1.msra.mxu0 0.0
        %575 = vmatprep.subr.mxu0 0.0
        %576 = vmatpush1.msra.mxu0 0.0
        %577 = vmatprep.subr.mxu0 0.0
        %578 = vmatpush1.msra.mxu0 0.0
        %579 = vmatprep.subr.mxu0 0.0
        %580 = vmatpush1.msra.mxu0 0.0
        %581 = vmatprep.subr.mxu0 0.0
        %582 = vmatpush1.msra.mxu0 0.0
        %583 = vmatprep.subr.mxu0 0.0
        %584 = vmatpush1.msra.mxu0 0.0
        %585 = vmatprep.subr.mxu0 0.0
        %586 = vmatpush1.msra.mxu0 0.0
        %587 = vmatprep.subr.mxu0 0.0
        %588 = vmatpush1.msra.mxu0 0.0
        %589 = vmatprep.subr.mxu0 0.0
        %590 = vmatpush1.msra.mxu0 0.0
        %591 = vmatprep.subr.mxu0 0.0
        %592 = vmatpush1.msra.mxu0 0.0
        %593 = vmatprep.subr.mxu0 0.0
        %594 = vmatpush1.msra.mxu0 0.0
        %595 = vmatprep.subr.mxu0 0.0
        %596 = vmatpush1.msra.mxu0 0.0
        %597 = vmatprep.subr.mxu0 0.0
        %598 = vmatpush1.msra.mxu0 0.0
        %599 = vmatprep.subr.mxu0 0.0
        %600 = vmatpush1.msra.mxu0 0.0
        %601 = vmatprep.subr.mxu0 0.0
        %602 = vmatpush1.msra.mxu0 0.0
        %603 = vmatprep.subr.mxu0 0.0
        %604 = vmatpush1.msra.mxu0 0.0
        %605 = vmatprep.subr.mxu0 0.0
        %606 = vmatpush1.msra.mxu0 0.0
        %607 = vmatprep.subr.mxu0 0.0
        %608 = vmatpush1.msra.mxu0 0.0
        %609 = vmatprep.subr.mxu0 0.0
        %610 = vmatpush1.msra.mxu0 0.0
        %611 = vmatprep.subr.mxu0 0.0
        %612 = vmatpush1.msra.mxu0 0.0
        %613 = vmatprep.subr.mxu0 0.0
        %614 = vmatpush1.msra.mxu0 0.0
        %615 = vmatprep.subr.mxu0 0.0
        %616 = vmatpush1.msra.mxu0 0.0
        %617 = vmatprep.subr.mxu0 0.0
        %618 = vmatpush1.msra.mxu0 0.0
        %619 = vmatprep.mubr.f32.mxu0 0.0
        %620 = vmatmul.mubr.f32.gmra.mrb[0].mxu0 %v473
        %v621 = vpop.f32.mrb[0].mxu0
        %v622 = vadd.f32 %v443, %v621
        %v623 = vpop.f32.mrb[0].mxu0
        %v624 = vadd.f32 %v445, %v623
        %625 = vmatprep.mubr.f32.mxu0 0.0
        %626 = vmatmul.mubr.f32.gmra.mrb[0].mxu0 %v476
        %v627 = vpop.f32.mrb[0].mxu0
        %v628 = vadd.f32 %v449, %v627
        %v629 = vpop.f32.mrb[0].mxu0
        %v630 = vadd.f32 %v451, %v629
        %631 = vdwg.mxu0
        %s632 = scalar_lea.vmem %s2, 32
        %v633 = vld [vmem:[%s632] sm:$0xff]
        %v634 = vld [vmem:[%s632 + $0x8] sm:$0xff]
        %635 = vrot.lane.b32.xlu0 %v258, 81
        %v636 = vpop.permute.xlu0 %635
        %637 = vrot.lane.b32.xlu0 %v259, 81
        %v638 = vpop.permute.xlu0 %637
        %639 = vrot.lane.b32.xlu0 %v260, 81
        %v640 = vpop.permute.xlu0 %639
        %641 = vrot.lane.b32.xlu0 %v261, 81
        %v642 = vpop.permute.xlu0 %641
        %643 = vrot.lane.b32.xlu0 %v262, 81
        %v644 = vpop.permute.xlu0 %643
        %vm645 = vcmask 662528
        %v646 = vsel %vm645, %v636, %v638
        %v647 = vsel %vm645, %v638, %v640
        %v648 = vsel %vm645, %v640, %v642
        %v649 = vsel %vm645, %v642, %v644
        %v655 = vsel %vm292, %v633, 0
        %v658 = vsel %vm292, %v634, 0
        %660 = vmatprep.subr.mxu0 %v647
        %661 = vmatpush1.msra.mxu0 %v646
        %662 = vmatprep.subr.mxu0 0.0
        %663 = vmatpush1.msra.mxu0 0.0
        %664 = vmatprep.subr.mxu0 0.0
        %665 = vmatpush1.msra.mxu0 0.0
        %666 = vmatprep.subr.mxu0 0.0
        %667 = vmatpush1.msra.mxu0 0.0
        %668 = vmatprep.subr.mxu0 0.0
        %669 = vmatpush1.msra.mxu0 0.0
        %670 = vmatprep.subr.mxu0 0.0
        %671 = vmatpush1.msra.mxu0 0.0
        %672 = vmatprep.subr.mxu0 0.0
        %673 = vmatpush1.msra.mxu0 0.0
        %674 = vmatprep.subr.mxu0 0.0
        %675 = vmatpush1.msra.mxu0 0.0
        %676 = vmatprep.subr.mxu0 0.0
        %677 = vmatpush1.msra.mxu0 0.0
        %678 = vmatprep.subr.mxu0 0.0
        %679 = vmatpush1.msra.mxu0 0.0
        %680 = vmatprep.subr.mxu0 0.0
        %681 = vmatpush1.msra.mxu0 0.0
        %682 = vmatprep.subr.mxu0 0.0
        %683 = vmatpush1.msra.mxu0 0.0
        %684 = vmatprep.subr.mxu0 0.0
        %685 = vmatpush1.msra.mxu0 0.0
        %686 = vmatprep.subr.mxu0 0.0
        %687 = vmatpush1.msra.mxu0 0.0
        %688 = vmatprep.subr.mxu0 0.0
        %689 = vmatpush1.msra.mxu0 0.0
        %690 = vmatprep.subr.mxu0 0.0
        %691 = vmatpush1.msra.mxu0 0.0
        %692 = vmatprep.subr.mxu0 0.0
        %693 = vmatpush1.msra.mxu0 0.0
        %694 = vmatprep.subr.mxu0 0.0
        %695 = vmatpush1.msra.mxu0 0.0
        %696 = vmatprep.subr.mxu0 0.0
        %697 = vmatpush1.msra.mxu0 0.0
        %698 = vmatprep.subr.mxu0 0.0
        %699 = vmatpush1.msra.mxu0 0.0
        %700 = vmatprep.subr.mxu0 0.0
        %701 = vmatpush1.msra.mxu0 0.0
        %702 = vmatprep.subr.mxu0 0.0
        %703 = vmatpush1.msra.mxu0 0.0
        %704 = vmatprep.subr.mxu0 0.0
        %705 = vmatpush1.msra.mxu0 0.0
        %706 = vmatprep.subr.mxu0 0.0
        %707 = vmatpush1.msra.mxu0 0.0
        %708 = vmatprep.subr.mxu0 0.0
        %709 = vmatpush1.msra.mxu0 0.0
        %710 = vmatprep.subr.mxu0 0.0
        %711 = vmatpush1.msra.mxu0 0.0
        %712 = vmatprep.subr.mxu0 0.0
        %713 = vmatpush1.msra.mxu0 0.0
        %714 = vmatprep.subr.mxu0 0.0
        %715 = vmatpush1.msra.mxu0 0.0
        %716 = vmatprep.subr.mxu0 0.0
        %717 = vmatpush1.msra.mxu0 0.0
        %718 = vmatprep.subr.mxu0 0.0
        %719 = vmatpush1.msra.mxu0 0.0
        %720 = vmatprep.subr.mxu0 0.0
        %721 = vmatpush1.msra.mxu0 0.0
        %722 = vmatprep.subr.mxu0 0.0
        %723 = vmatpush1.msra.mxu0 0.0
        %724 = vmatprep.mubr.f32.mxu0 0.0
        %725 = vmatmul.mubr.f32.gmra.mrb[0].mxu0 %v655
        %v726 = vpop.f32.mrb[0].mxu0
        %v727 = vadd.f32 0.0, %v726
        %v728 = vpop.f32.mrb[0].mxu0
        %v729 = vadd.f32 0.0, %v728
        %730 = vmatprep.mubr.f32.mxu0 0.0
        %731 = vmatmul.mubr.f32.gmra.mrb[0].mxu0 %v658
        %v732 = vpop.f32.mrb[0].mxu0
        %v733 = vadd.f32 0.0, %v732
        %v734 = vpop.f32.mrb[0].mxu0
        %v735 = vadd.f32 0.0, %v734
        %736 = vdwg.mxu0
        %737 = vmatprep.subr.mxu0 %v649
        %738 = vmatpush1.msra.mxu0 %v648
        %739 = vmatprep.subr.mxu0 0.0
        %740 = vmatpush1.msra.mxu0 0.0
        %741 = vmatprep.subr.mxu0 0.0
        %742 = vmatpush1.msra.mxu0 0.0
        %743 = vmatprep.subr.mxu0 0.0
        %744 = vmatpush1.msra.mxu0 0.0
        %745 = vmatprep.subr.mxu0 0.0
        %746 = vmatpush1.msra.mxu0 0.0
        %747 = vmatprep.subr.mxu0 0.0
        %748 = vmatpush1.msra.mxu0 0.0
        %749 = vmatprep.subr.mxu0 0.0
        %750 = vmatpush1.msra.mxu0 0.0
        %751 = vmatprep.subr.mxu0 0.0
        %752 = vmatpush1.msra.mxu0 0.0
        %753 = vmatprep.subr.mxu0 0.0
        %754 = vmatpush1.msra.mxu0 0.0
        %755 = vmatprep.subr.mxu0 0.0
        %756 = vmatpush1.msra.mxu0 0.0
        %757 = vmatprep.subr.mxu0 0.0
        %758 = vmatpush1.msra.mxu0 0.0
        %759 = vmatprep.subr.mxu0 0.0
        %760 = vmatpush1.msra.mxu0 0.0
        %761 = vmatprep.subr.mxu0 0.0
        %762 = vmatpush1.msra.mxu0 0.0
        %763 = vmatprep.subr.mxu0 0.0
        %764 = vmatpush1.msra.mxu0 0.0
        %765 = vmatprep.subr.mxu0 0.0
        %766 = vmatpush1.msra.mxu0 0.0
        %767 = vmatprep.subr.mxu0 0.0
        %768 = vmatpush1.msra.mxu0 0.0
        %769 = vmatprep.subr.mxu0 0.0
        %770 = vmatpush1.msra.mxu0 0.0
        %771 = vmatprep.subr.mxu0 0.0
        %772 = vmatpush1.msra.mxu0 0.0
        %773 = vmatprep.subr.mxu0 0.0
        %774 = vmatpush1.msra.mxu0 0.0
        %775 = vmatprep.subr.mxu0 0.0
        %776 = vmatpush1.msra.mxu0 0.0
        %777 = vmatprep.subr.mxu0 0.0
        %778 = vmatpush1.msra.mxu0 0.0
        %779 = vmatprep.subr.mxu0 0.0
        %780 = vmatpush1.msra.mxu0 0.0
        %781 = vmatprep.subr.mxu0 0.0
        %782 = vmatpush1.msra.mxu0 0.0
        %783 = vmatprep.subr.mxu0 0.0
        %784 = vmatpush1.msra.mxu0 0.0
        %785 = vmatprep.subr.mxu0 0.0
        %786 = vmatpush1.msra.mxu0 0.0
        %787 = vmatprep.subr.mxu0 0.0
        %788 = vmatpush1.msra.mxu0 0.0
        %789 = vmatprep.subr.mxu0 0.0
        %790 = vmatpush1.msra.mxu0 0.0
        %791 = vmatprep.subr.mxu0 0.0
        %792 = vmatpush1.msra.mxu0 0.0
        %793 = vmatprep.subr.mxu0 0.0
        %794 = vmatpush1.msra.mxu0 0.0
        %795 = vmatprep.subr.mxu0 0.0
        %796 = vmatpush1.msra.mxu0 0.0
        %797 = vmatprep.subr.mxu0 0.0
        %798 = vmatpush1.msra.mxu0 0.0
        %799 = vmatprep.subr.mxu0 0.0
        %800 = vmatpush1.msra.mxu0 0.0
        %801 = vmatprep.mubr.f32.mxu0 0.0
        %802 = vmatmul.mubr.f32.gmra.mrb[0].mxu0 %v655
        %v803 = vpop.f32.mrb[0].mxu0
        %v804 = vadd.f32 0.0, %v803
        %v805 = vpop.f32.mrb[0].mxu0
        %v806 = vadd.f32 0.0, %v805
        %807 = vmatprep.mubr.f32.mxu0 0.0
        %808 = vmatmul.mubr.f32.gmra.mrb[0].mxu0 %v658
        %v809 = vpop.f32.mrb[0].mxu0
        %v810 = vadd.f32 0.0, %v809
        %v811 = vpop.f32.mrb[0].mxu0
        %v812 = vadd.f32 0.0, %v811
        %813 = vdwg.mxu0
        %v814 = vadd.f32 %v545, %v727
        %v815 = vadd.f32 %v547, %v729
        %v816 = vadd.f32 %v622, %v804
        %v817 = vadd.f32 %v624, %v806
        %v818 = vadd.f32 %v551, %v733
        %v819 = vadd.f32 %v553, %v735
        %v820 = vadd.f32 %v628, %v810
        %v821 = vadd.f32 %v630, %v812
        %s822 = scalar_lea.vmem %s2, 48
        %v823 = vld [vmem:[%s822] sm:$0xff]
        %v824 = vld [vmem:[%s822 + $0x8] sm:$0xff]
        %825 = vrot.lane.b32.xlu0 %v258, 65
        %v826 = vpop.permute.xlu0 %825
        %827 = vrot.lane.b32.xlu0 %v259, 65
        %v828 = vpop.permute.xlu0 %827
        %829 = vrot.lane.b32.xlu0 %v260, 65
        %v830 = vpop.permute.xlu0 %829
        %831 = vrot.lane.b32.xlu0 %v261, 65
        %v832 = vpop.permute.xlu0 %831
        %833 = vrot.lane.b32.xlu0 %v262, 65
        %v834 = vpop.permute.xlu0 %833
        %vm835 = vcmask 531456
        %v836 = vsel %vm835, %v826, %v828
        %v837 = vsel %vm835, %v828, %v830
        %v838 = vsel %vm835, %v830, %v832
        %v839 = vsel %vm835, %v832, %v834
        %v845 = vsel %vm292, %v823, 0
        %v848 = vsel %vm292, %v824, 0
        %850 = vmatprep.subr.mxu0 %v837
        %851 = vmatpush1.msra.mxu0 %v836
        %852 = vmatprep.subr.mxu0 0.0
        %853 = vmatpush1.msra.mxu0 0.0
        %854 = vmatprep.subr.mxu0 0.0
        %855 = vmatpush1.msra.mxu0 0.0
        %856 = vmatprep.subr.mxu0 0.0
        %857 = vmatpush1.msra.mxu0 0.0
        %858 = vmatprep.subr.mxu0 0.0
        %859 = vmatpush1.msra.mxu0 0.0
        %860 = vmatprep.subr.mxu0 0.0
        %861 = vmatpush1.msra.mxu0 0.0
        %862 = vmatprep.subr.mxu0 0.0
        %863 = vmatpush1.msra.mxu0 0.0
        %864 = vmatprep.subr.mxu0 0.0
        %865 = vmatpush1.msra.mxu0 0.0
        %866 = vmatprep.subr.mxu0 0.0
        %867 = vmatpush1.msra.mxu0 0.0
        %868 = vmatprep.subr.mxu0 0.0
        %869 = vmatpush1.msra.mxu0 0.0
        %870 = vmatprep.subr.mxu0 0.0
        %871 = vmatpush1.msra.mxu0 0.0
        %872 = vmatprep.subr.mxu0 0.0
        %873 = vmatpush1.msra.mxu0 0.0
        %874 = vmatprep.subr.mxu0 0.0
        %875 = vmatpush1.msra.mxu0 0.0
        %876 = vmatprep.subr.mxu0 0.0
        %877 = vmatpush1.msra.mxu0 0.0
        %878 = vmatprep.subr.mxu0 0.0
        %879 = vmatpush1.msra.mxu0 0.0
        %880 = vmatprep.subr.mxu0 0.0
        %881 = vmatpush1.msra.mxu0 0.0
        %882 = vmatprep.subr.mxu0 0.0
        %883 = vmatpush1.msra.mxu0 0.0
        %884 = vmatprep.subr.mxu0 0.0
        %885 = vmatpush1.msra.mxu0 0.0
        %886 = vmatprep.subr.mxu0 0.0
        %887 = vmatpush1.msra.mxu0 0.0
        %888 = vmatprep.subr.mxu0 0.0
        %889 = vmatpush1.msra.mxu0 0.0
        %890 = vmatprep.subr.mxu0 0.0
        %891 = vmatpush1.msra.mxu0 0.0
        %892 = vmatprep.subr.mxu0 0.0
        %893 = vmatpush1.msra.mxu0 0.0
        %894 = vmatprep.subr.mxu0 0.0
        %895 = vmatpush1.msra.mxu0 0.0
        %896 = vmatprep.subr.mxu0 0.0
        %897 = vmatpush1.msra.mxu0 0.0
        %898 = vmatprep.subr.mxu0 0.0
        %899 = vmatpush1.msra.mxu0 0.0
        %900 = vmatprep.subr.mxu0 0.0
        %901 = vmatpush1.msra.mxu0 0.0
        %902 = vmatprep.subr.mxu0 0.0
        %903 = vmatpush1.msra.mxu0 0.0
        %904 = vmatprep.subr.mxu0 0.0
        %905 = vmatpush1.msra.mxu0 0.0
        %906 = vmatprep.subr.mxu0 0.0
        %907 = vmatpush1.msra.mxu0 0.0
        %908 = vmatprep.subr.mxu0 0.0
        %909 = vmatpush1.msra.mxu0 0.0
        %910 = vmatprep.subr.mxu0 0.0
        %911 = vmatpush1.msra.mxu0 0.0
        %912 = vmatprep.subr.mxu0 0.0
        %913 = vmatpush1.msra.mxu0 0.0
        %914 = vmatprep.mubr.f32.mxu0 0.0
        %915 = vmatmul.mubr.f32.gmra.mrb[0].mxu0 %v845
        %v916 = vpop.f32.mrb[0].mxu0
        %v917 = vadd.f32 0.0, %v916
        %v918 = vpop.f32.mrb[0].mxu0
        %v919 = vadd.f32 0.0, %v918
        %920 = vmatprep.mubr.f32.mxu0 0.0
        %921 = vmatmul.mubr.f32.gmra.mrb[0].mxu0 %v848
        %v922 = vpop.f32.mrb[0].mxu0
        %v923 = vadd.f32 0.0, %v922
        %v924 = vpop.f32.mrb[0].mxu0
        %v925 = vadd.f32 0.0, %v924
        %926 = vdwg.mxu0
        %927 = vmatprep.subr.mxu0 %v839
        %928 = vmatpush1.msra.mxu0 %v838
        %929 = vmatprep.subr.mxu0 0.0
        %930 = vmatpush1.msra.mxu0 0.0
        %931 = vmatprep.subr.mxu0 0.0
        %932 = vmatpush1.msra.mxu0 0.0
        %933 = vmatprep.subr.mxu0 0.0
        %934 = vmatpush1.msra.mxu0 0.0
        %935 = vmatprep.subr.mxu0 0.0
        %936 = vmatpush1.msra.mxu0 0.0
        %937 = vmatprep.subr.mxu0 0.0
        %938 = vmatpush1.msra.mxu0 0.0
        %939 = vmatprep.subr.mxu0 0.0
        %940 = vmatpush1.msra.mxu0 0.0
        %941 = vmatprep.subr.mxu0 0.0
        %942 = vmatpush1.msra.mxu0 0.0
        %943 = vmatprep.subr.mxu0 0.0
        %944 = vmatpush1.msra.mxu0 0.0
        %945 = vmatprep.subr.mxu0 0.0
        %946 = vmatpush1.msra.mxu0 0.0
        %947 = vmatprep.subr.mxu0 0.0
        %948 = vmatpush1.msra.mxu0 0.0
        %949 = vmatprep.subr.mxu0 0.0
        %950 = vmatpush1.msra.mxu0 0.0
        %951 = vmatprep.subr.mxu0 0.0
        %952 = vmatpush1.msra.mxu0 0.0
        %953 = vmatprep.subr.mxu0 0.0
        %954 = vmatpush1.msra.mxu0 0.0
        %955 = vmatprep.subr.mxu0 0.0
        %956 = vmatpush1.msra.mxu0 0.0
        %957 = vmatprep.subr.mxu0 0.0
        %958 = vmatpush1.msra.mxu0 0.0
        %959 = vmatprep.subr.mxu0 0.0
        %960 = vmatpush1.msra.mxu0 0.0
        %961 = vmatprep.subr.mxu0 0.0
        %962 = vmatpush1.msra.mxu0 0.0
        %963 = vmatprep.subr.mxu0 0.0
        %964 = vmatpush1.msra.mxu0 0.0
        %965 = vmatprep.subr.mxu0 0.0
        %966 = vmatpush1.msra.mxu0 0.0
        %967 = vmatprep.subr.mxu0 0.0
        %968 = vmatpush1.msra.mxu0 0.0
        %969 = vmatprep.subr.mxu0 0.0
        %970 = vmatpush1.msra.mxu0 0.0
        %971 = vmatprep.subr.mxu0 0.0
        %972 = vmatpush1.msra.mxu0 0.0
        %973 = vmatprep.subr.mxu0 0.0
        %974 = vmatpush1.msra.mxu0 0.0
        %975 = vmatprep.subr.mxu0 0.0
        %976 = vmatpush1.msra.mxu0 0.0
        %977 = vmatprep.subr.mxu0 0.0
        %978 = vmatpush1.msra.mxu0 0.0
        %979 = vmatprep.subr.mxu0 0.0
        %980 = vmatpush1.msra.mxu0 0.0
        %981 = vmatprep.subr.mxu0 0.0
        %982 = vmatpush1.msra.mxu0 0.0
        %983 = vmatprep.subr.mxu0 0.0
        %984 = vmatpush1.msra.mxu0 0.0
        %985 = vmatprep.subr.mxu0 0.0
        %986 = vmatpush1.msra.mxu0 0.0
        %987 = vmatprep.subr.mxu0 0.0
        %988 = vmatpush1.msra.mxu0 0.0
        %989 = vmatprep.subr.mxu0 0.0
        %990 = vmatpush1.msra.mxu0 0.0
        %991 = vmatprep.mubr.f32.mxu0 0.0
        %992 = vmatmul.mubr.f32.gmra.mrb[0].mxu0 %v845
        %v993 = vpop.f32.mrb[0].mxu0
        %v994 = vadd.f32 0.0, %v993
        %v995 = vpop.f32.mrb[0].mxu0
        %v996 = vadd.f32 0.0, %v995
        %997 = vmatprep.mubr.f32.mxu0 0.0
        %998 = vmatmul.mubr.f32.gmra.mrb[0].mxu0 %v848
        %v999 = vpop.f32.mrb[0].mxu0
        %v1000 = vadd.f32 0.0, %v999
        %v1001 = vpop.f32.mrb[0].mxu0
        %v1002 = vadd.f32 0.0, %v1001
        %1003 = vdwg.mxu0
        %v1004 = vadd.f32 %v814, %v917
        %v1005 = vadd.f32 %v815, %v919
        %v1006 = vadd.f32 %v816, %v994
        %v1007 = vadd.f32 %v817, %v996
        %v1008 = vadd.f32 %v818, %v923
        %v1009 = vadd.f32 %v819, %v925
        %v1010 = vadd.f32 %v820, %v1000
        %v1011 = vadd.f32 %v821, %v1002
        %s1012 = scalar_lea.vmem %s2, 64
        %v1013 = vld [vmem:[%s1012] sm:$0xff]
        %v1014 = vld [vmem:[%s1012 + $0x8] sm:$0xff]
        %1015 = vrot.lane.b32.xlu0 %v258, 64
        %v1016 = vpop.permute.xlu0 %1015
        %1017 = vrot.lane.b32.xlu0 %v259, 64
        %v1018 = vpop.permute.xlu0 %1017
        %1019 = vrot.lane.b32.xlu0 %v260, 64
        %v1020 = vpop.permute.xlu0 %1019
        %1021 = vrot.lane.b32.xlu0 %v261, 64
        %v1022 = vpop.permute.xlu0 %1021
        %1023 = vrot.lane.b32.xlu0 %v262, 64
        %v1024 = vpop.permute.xlu0 %1023
        %vm1025 = vcmask 523264
        %v1026 = vsel %vm1025, %v1016, %v1018
        %v1027 = vsel %vm1025, %v1018, %v1020
        %v1028 = vsel %vm1025, %v1020, %v1022
        %v1029 = vsel %vm1025, %v1022, %v1024
        %v1035 = vsel %vm292, %v1013, 0
        %v1038 = vsel %vm292, %v1014, 0
        %1040 = vmatprep.subr.mxu0 %v1027
        %1041 = vmatpush1.msra.mxu0 %v1026
        %1042 = vmatprep.subr.mxu0 0.0
        %1043 = vmatpush1.msra.mxu0 0.0
        %1044 = vmatprep.subr.mxu0 0.0
        %1045 = vmatpush1.msra.mxu0 0.0
        %1046 = vmatprep.subr.mxu0 0.0
        %1047 = vmatpush1.msra.mxu0 0.0
        %1048 = vmatprep.subr.mxu0 0.0
        %1049 = vmatpush1.msra.mxu0 0.0
        %1050 = vmatprep.subr.mxu0 0.0
        %1051 = vmatpush1.msra.mxu0 0.0
        %1052 = vmatprep.subr.mxu0 0.0
        %1053 = vmatpush1.msra.mxu0 0.0
        %1054 = vmatprep.subr.mxu0 0.0
        %1055 = vmatpush1.msra.mxu0 0.0
        %1056 = vmatprep.subr.mxu0 0.0
        %1057 = vmatpush1.msra.mxu0 0.0
        %1058 = vmatprep.subr.mxu0 0.0
        %1059 = vmatpush1.msra.mxu0 0.0
        %1060 = vmatprep.subr.mxu0 0.0
        %1061 = vmatpush1.msra.mxu0 0.0
        %1062 = vmatprep.subr.mxu0 0.0
        %1063 = vmatpush1.msra.mxu0 0.0
        %1064 = vmatprep.subr.mxu0 0.0
        %1065 = vmatpush1.msra.mxu0 0.0
        %1066 = vmatprep.subr.mxu0 0.0
        %1067 = vmatpush1.msra.mxu0 0.0
        %1068 = vmatprep.subr.mxu0 0.0
        %1069 = vmatpush1.msra.mxu0 0.0
        %1070 = vmatprep.subr.mxu0 0.0
        %1071 = vmatpush1.msra.mxu0 0.0
        %1072 = vmatprep.subr.mxu0 0.0
        %1073 = vmatpush1.msra.mxu0 0.0
        %1074 = vmatprep.subr.mxu0 0.0
        %1075 = vmatpush1.msra.mxu0 0.0
        %1076 = vmatprep.subr.mxu0 0.0
        %1077 = vmatpush1.msra.mxu0 0.0
        %1078 = vmatprep.subr.mxu0 0.0
        %1079 = vmatpush1.msra.mxu0 0.0
        %1080 = vmatprep.subr.mxu0 0.0
        %1081 = vmatpush1.msra.mxu0 0.0
        %1082 = vmatprep.subr.mxu0 0.0
        %1083 = vmatpush1.msra.mxu0 0.0
        %1084 = vmatprep.subr.mxu0 0.0
        %1085 = vmatpush1.msra.mxu0 0.0
        %1086 = vmatprep.subr.mxu0 0.0
        %1087 = vmatpush1.msra.mxu0 0.0
        %1088 = vmatprep.subr.mxu0 0.0
        %1089 = vmatpush1.msra.mxu0 0.0
        %1090 = vmatprep.subr.mxu0 0.0
        %1091 = vmatpush1.msra.mxu0 0.0
        %1092 = vmatprep.subr.mxu0 0.0
        %1093 = vmatpush1.msra.mxu0 0.0
        %1094 = vmatprep.subr.mxu0 0.0
        %1095 = vmatpush1.msra.mxu0 0.0
        %1096 = vmatprep.subr.mxu0 0.0
        %1097 = vmatpush1.msra.mxu0 0.0
        %1098 = vmatprep.subr.mxu0 0.0
        %1099 = vmatpush1.msra.mxu0 0.0
        %1100 = vmatprep.subr.mxu0 0.0
        %1101 = vmatpush1.msra.mxu0 0.0
        %1102 = vmatprep.subr.mxu0 0.0
        %1103 = vmatpush1.msra.mxu0 0.0
        %1104 = vmatprep.mubr.f32.mxu0 0.0
        %1105 = vmatmul.mubr.f32.gmra.mrb[0].mxu0 %v1035
        %v1106 = vpop.f32.mrb[0].mxu0
        %v1107 = vadd.f32 0.0, %v1106
        %v1108 = vpop.f32.mrb[0].mxu0
        %v1109 = vadd.f32 0.0, %v1108
        %1110 = vmatprep.mubr.f32.mxu0 0.0
        %1111 = vmatmul.mubr.f32.gmra.mrb[0].mxu0 %v1038
        %v1112 = vpop.f32.mrb[0].mxu0
        %v1113 = vadd.f32 0.0, %v1112
        %v1114 = vpop.f32.mrb[0].mxu0
        %v1115 = vadd.f32 0.0, %v1114
        %1116 = vdwg.mxu0
        %1117 = vmatprep.subr.mxu0 %v1029
        %1118 = vmatpush1.msra.mxu0 %v1028
        %1119 = vmatprep.subr.mxu0 0.0
        %1120 = vmatpush1.msra.mxu0 0.0
        %1121 = vmatprep.subr.mxu0 0.0
        %1122 = vmatpush1.msra.mxu0 0.0
        %1123 = vmatprep.subr.mxu0 0.0
        %1124 = vmatpush1.msra.mxu0 0.0
        %1125 = vmatprep.subr.mxu0 0.0
        %1126 = vmatpush1.msra.mxu0 0.0
        %1127 = vmatprep.subr.mxu0 0.0
        %1128 = vmatpush1.msra.mxu0 0.0
        %1129 = vmatprep.subr.mxu0 0.0
        %1130 = vmatpush1.msra.mxu0 0.0
        %1131 = vmatprep.subr.mxu0 0.0
        %1132 = vmatpush1.msra.mxu0 0.0
        %1133 = vmatprep.subr.mxu0 0.0
        %1134 = vmatpush1.msra.mxu0 0.0
        %1135 = vmatprep.subr.mxu0 0.0
        %1136 = vmatpush1.msra.mxu0 0.0
        %1137 = vmatprep.subr.mxu0 0.0
        %1138 = vmatpush1.msra.mxu0 0.0
        %1139 = vmatprep.subr.mxu0 0.0
        %1140 = vmatpush1.msra.mxu0 0.0
        %1141 = vmatprep.subr.mxu0 0.0
        %1142 = vmatpush1.msra.mxu0 0.0
        %1143 = vmatprep.subr.mxu0 0.0
        %1144 = vmatpush1.msra.mxu0 0.0
        %1145 = vmatprep.subr.mxu0 0.0
        %1146 = vmatpush1.msra.mxu0 0.0
        %1147 = vmatprep.subr.mxu0 0.0
        %1148 = vmatpush1.msra.mxu0 0.0
        %1149 = vmatprep.subr.mxu0 0.0
        %1150 = vmatpush1.msra.mxu0 0.0
        %1151 = vmatprep.subr.mxu0 0.0
        %1152 = vmatpush1.msra.mxu0 0.0
        %1153 = vmatprep.subr.mxu0 0.0
        %1154 = vmatpush1.msra.mxu0 0.0
        %1155 = vmatprep.subr.mxu0 0.0
        %1156 = vmatpush1.msra.mxu0 0.0
        %1157 = vmatprep.subr.mxu0 0.0
        %1158 = vmatpush1.msra.mxu0 0.0
        %1159 = vmatprep.subr.mxu0 0.0
        %1160 = vmatpush1.msra.mxu0 0.0
        %1161 = vmatprep.subr.mxu0 0.0
        %1162 = vmatpush1.msra.mxu0 0.0
        %1163 = vmatprep.subr.mxu0 0.0
        %1164 = vmatpush1.msra.mxu0 0.0
        %1165 = vmatprep.subr.mxu0 0.0
        %1166 = vmatpush1.msra.mxu0 0.0
        %1167 = vmatprep.subr.mxu0 0.0
        %1168 = vmatpush1.msra.mxu0 0.0
        %1169 = vmatprep.subr.mxu0 0.0
        %1170 = vmatpush1.msra.mxu0 0.0
        %1171 = vmatprep.subr.mxu0 0.0
        %1172 = vmatpush1.msra.mxu0 0.0
        %1173 = vmatprep.subr.mxu0 0.0
        %1174 = vmatpush1.msra.mxu0 0.0
        %1175 = vmatprep.subr.mxu0 0.0
        %1176 = vmatpush1.msra.mxu0 0.0
        %1177 = vmatprep.subr.mxu0 0.0
        %1178 = vmatpush1.msra.mxu0 0.0
        %1179 = vmatprep.subr.mxu0 0.0
        %1180 = vmatpush1.msra.mxu0 0.0
        %1181 = vmatprep.mubr.f32.mxu0 0.0
        %1182 = vmatmul.mubr.f32.gmra.mrb[0].mxu0 %v1035
        %v1183 = vpop.f32.mrb[0].mxu0
        %v1184 = vadd.f32 0.0, %v1183
        %v1185 = vpop.f32.mrb[0].mxu0
        %v1186 = vadd.f32 0.0, %v1185
        %1187 = vmatprep.mubr.f32.mxu0 0.0
        %1188 = vmatmul.mubr.f32.gmra.mrb[0].mxu0 %v1038
        %v1189 = vpop.f32.mrb[0].mxu0
        %v1190 = vadd.f32 0.0, %v1189
        %v1191 = vpop.f32.mrb[0].mxu0
        %v1192 = vadd.f32 0.0, %v1191
        %1193 = vdwg.mxu0
        %v1194 = vadd.f32 %v1004, %v1107
        %v1195 = vadd.f32 %v1005, %v1109
        %v1196 = vadd.f32 %v1006, %v1184
        %v1197 = vadd.f32 %v1007, %v1186
        %v1198 = vadd.f32 %v1008, %v1113
        %v1199 = vadd.f32 %v1009, %v1115
        %v1200 = vadd.f32 %v1010, %v1190
        %v1201 = vadd.f32 %v1011, %v1192
        %s1202 = scalar_lea.vmem %s2, 80
        %v1203 = vld [vmem:[%s1202] sm:$0xff]
        %v1204 = vld [vmem:[%s1202 + $0x8] sm:$0xff]
        %1205 = vrot.lane.b32.xlu0 %v258, 63
        %v1206 = vpop.permute.xlu0 %1205
        %1207 = vrot.lane.b32.xlu0 %v259, 63
        %v1208 = vpop.permute.xlu0 %1207
        %1209 = vrot.lane.b32.xlu0 %v260, 63
        %v1210 = vpop.permute.xlu0 %1209
        %1211 = vrot.lane.b32.xlu0 %v261, 63
        %v1212 = vpop.permute.xlu0 %1211
        %1213 = vrot.lane.b32.xlu0 %v262, 63
        %v1214 = vpop.permute.xlu0 %1213
        %vm1215 = vcmask 515072
        %v1216 = vsel %vm1215, %v1206, %v1208
        %v1217 = vsel %vm1215, %v1208, %v1210
        %v1218 = vsel %vm1215, %v1210, %v1212
        %v1219 = vsel %vm1215, %v1212, %v1214
        %v1225 = vsel %vm292, %v1203, 0
        %v1228 = vsel %vm292, %v1204, 0
        %1230 = vmatprep.subr.mxu0 %v1217
        %1231 = vmatpush1.msra.mxu0 %v1216
        %1232 = vmatprep.subr.mxu0 0.0
        %1233 = vmatpush1.msra.mxu0 0.0
        %1234 = vmatprep.subr.mxu0 0.0
        %1235 = vmatpush1.msra.mxu0 0.0
        %1236 = vmatprep.subr.mxu0 0.0
        %1237 = vmatpush1.msra.mxu0 0.0
        %1238 = vmatprep.subr.mxu0 0.0
        %1239 = vmatpush1.msra.mxu0 0.0
        %1240 = vmatprep.subr.mxu0 0.0
        %1241 = vmatpush1.msra.mxu0 0.0
        %1242 = vmatprep.subr.mxu0 0.0
        %1243 = vmatpush1.msra.mxu0 0.0
        %1244 = vmatprep.subr.mxu0 0.0
        %1245 = vmatpush1.msra.mxu0 0.0
        %1246 = vmatprep.subr.mxu0 0.0
        %1247 = vmatpush1.msra.mxu0 0.0
        %1248 = vmatprep.subr.mxu0 0.0
        %1249 = vmatpush1.msra.mxu0 0.0
        %1250 = vmatprep.subr.mxu0 0.0
        %1251 = vmatpush1.msra.mxu0 0.0
        %1252 = vmatprep.subr.mxu0 0.0
        %1253 = vmatpush1.msra.mxu0 0.0
        %1254 = vmatprep.subr.mxu0 0.0
        %1255 = vmatpush1.msra.mxu0 0.0
        %1256 = vmatprep.subr.mxu0 0.0
        %1257 = vmatpush1.msra.mxu0 0.0
        %1258 = vmatprep.subr.mxu0 0.0
        %1259 = vmatpush1.msra.mxu0 0.0
        %1260 = vmatprep.subr.mxu0 0.0
        %1261 = vmatpush1.msra.mxu0 0.0
        %1262 = vmatprep.subr.mxu0 0.0
        %1263 = vmatpush1.msra.mxu0 0.0
        %1264 = vmatprep.subr.mxu0 0.0
        %1265 = vmatpush1.msra.mxu0 0.0
        %1266 = vmatprep.subr.mxu0 0.0
        %1267 = vmatpush1.msra.mxu0 0.0
        %1268 = vmatprep.subr.mxu0 0.0
        %1269 = vmatpush1.msra.mxu0 0.0
        %1270 = vmatprep.subr.mxu0 0.0
        %1271 = vmatpush1.msra.mxu0 0.0
        %1272 = vmatprep.subr.mxu0 0.0
        %1273 = vmatpush1.msra.mxu0 0.0
        %1274 = vmatprep.subr.mxu0 0.0
        %1275 = vmatpush1.msra.mxu0 0.0
        %1276 = vmatprep.subr.mxu0 0.0
        %1277 = vmatpush1.msra.mxu0 0.0
        %1278 = vmatprep.subr.mxu0 0.0
        %1279 = vmatpush1.msra.mxu0 0.0
        %1280 = vmatprep.subr.mxu0 0.0
        %1281 = vmatpush1.msra.mxu0 0.0
        %1282 = vmatprep.subr.mxu0 0.0
        %1283 = vmatpush1.msra.mxu0 0.0
        %1284 = vmatprep.subr.mxu0 0.0
        %1285 = vmatpush1.msra.mxu0 0.0
        %1286 = vmatprep.subr.mxu0 0.0
        %1287 = vmatpush1.msra.mxu0 0.0
        %1288 = vmatprep.subr.mxu0 0.0
        %1289 = vmatpush1.msra.mxu0 0.0
        %1290 = vmatprep.subr.mxu0 0.0
        %1291 = vmatpush1.msra.mxu0 0.0
        %1292 = vmatprep.subr.mxu0 0.0
        %1293 = vmatpush1.msra.mxu0 0.0
        %1294 = vmatprep.mubr.f32.mxu0 0.0
        %1295 = vmatmul.mubr.f32.gmra.mrb[0].mxu0 %v1225
        %v1296 = vpop.f32.mrb[0].mxu0
        %v1297 = vadd.f32 0.0, %v1296
        %v1298 = vpop.f32.mrb[0].mxu0
        %v1299 = vadd.f32 0.0, %v1298
        %1300 = vmatprep.mubr.f32.mxu0 0.0
        %1301 = vmatmul.mubr.f32.gmra.mrb[0].mxu0 %v1228
        %v1302 = vpop.f32.mrb[0].mxu0
        %v1303 = vadd.f32 0.0, %v1302
        %v1304 = vpop.f32.mrb[0].mxu0
        %v1305 = vadd.f32 0.0, %v1304
        %1306 = vdwg.mxu0
        %1307 = vmatprep.subr.mxu0 %v1219
        %1308 = vmatpush1.msra.mxu0 %v1218
        %1309 = vmatprep.subr.mxu0 0.0
        %1310 = vmatpush1.msra.mxu0 0.0
        %1311 = vmatprep.subr.mxu0 0.0
        %1312 = vmatpush1.msra.mxu0 0.0
        %1313 = vmatprep.subr.mxu0 0.0
        %1314 = vmatpush1.msra.mxu0 0.0
        %1315 = vmatprep.subr.mxu0 0.0
        %1316 = vmatpush1.msra.mxu0 0.0
        %1317 = vmatprep.subr.mxu0 0.0
        %1318 = vmatpush1.msra.mxu0 0.0
        %1319 = vmatprep.subr.mxu0 0.0
        %1320 = vmatpush1.msra.mxu0 0.0
        %1321 = vmatprep.subr.mxu0 0.0
        %1322 = vmatpush1.msra.mxu0 0.0
        %1323 = vmatprep.subr.mxu0 0.0
        %1324 = vmatpush1.msra.mxu0 0.0
        %1325 = vmatprep.subr.mxu0 0.0
        %1326 = vmatpush1.msra.mxu0 0.0
        %1327 = vmatprep.subr.mxu0 0.0
        %1328 = vmatpush1.msra.mxu0 0.0
        %1329 = vmatprep.subr.mxu0 0.0
        %1330 = vmatpush1.msra.mxu0 0.0
        %1331 = vmatprep.subr.mxu0 0.0
        %1332 = vmatpush1.msra.mxu0 0.0
        %1333 = vmatprep.subr.mxu0 0.0
        %1334 = vmatpush1.msra.mxu0 0.0
        %1335 = vmatprep.subr.mxu0 0.0
        %1336 = vmatpush1.msra.mxu0 0.0
        %1337 = vmatprep.subr.mxu0 0.0
        %1338 = vmatpush1.msra.mxu0 0.0
        %1339 = vmatprep.subr.mxu0 0.0
        %1340 = vmatpush1.msra.mxu0 0.0
        %1341 = vmatprep.subr.mxu0 0.0
        %1342 = vmatpush1.msra.mxu0 0.0
        %1343 = vmatprep.subr.mxu0 0.0
        %1344 = vmatpush1.msra.mxu0 0.0
        %1345 = vmatprep.subr.mxu0 0.0
        %1346 = vmatpush1.msra.mxu0 0.0
        %1347 = vmatprep.subr.mxu0 0.0
        %1348 = vmatpush1.msra.mxu0 0.0
        %1349 = vmatprep.subr.mxu0 0.0
        %1350 = vmatpush1.msra.mxu0 0.0
        %1351 = vmatprep.subr.mxu0 0.0
        %1352 = vmatpush1.msra.mxu0 0.0
        %1353 = vmatprep.subr.mxu0 0.0
        %1354 = vmatpush1.msra.mxu0 0.0
        %1355 = vmatprep.subr.mxu0 0.0
        %1356 = vmatpush1.msra.mxu0 0.0
        %1357 = vmatprep.subr.mxu0 0.0
        %1358 = vmatpush1.msra.mxu0 0.0
        %1359 = vmatprep.subr.mxu0 0.0
        %1360 = vmatpush1.msra.mxu0 0.0
        %1361 = vmatprep.subr.mxu0 0.0
        %1362 = vmatpush1.msra.mxu0 0.0
        %1363 = vmatprep.subr.mxu0 0.0
        %1364 = vmatpush1.msra.mxu0 0.0
        %1365 = vmatprep.subr.mxu0 0.0
        %1366 = vmatpush1.msra.mxu0 0.0
        %1367 = vmatprep.subr.mxu0 0.0
        %1368 = vmatpush1.msra.mxu0 0.0
        %1369 = vmatprep.subr.mxu0 0.0
        %1370 = vmatpush1.msra.mxu0 0.0
        %1371 = vmatprep.mubr.f32.mxu0 0.0
        %1372 = vmatmul.mubr.f32.gmra.mrb[0].mxu0 %v1225
        %v1373 = vpop.f32.mrb[0].mxu0
        %v1374 = vadd.f32 0.0, %v1373
        %v1375 = vpop.f32.mrb[0].mxu0
        %v1376 = vadd.f32 0.0, %v1375
        %1377 = vmatprep.mubr.f32.mxu0 0.0
        %1378 = vmatmul.mubr.f32.gmra.mrb[0].mxu0 %v1228
        %v1379 = vpop.f32.mrb[0].mxu0
        %v1380 = vadd.f32 0.0, %v1379
        %v1381 = vpop.f32.mrb[0].mxu0
        %v1382 = vadd.f32 0.0, %v1381
        %1383 = vdwg.mxu0
        %v1384 = vadd.f32 %v1194, %v1297
        %v1385 = vadd.f32 %v1195, %v1299
        %v1386 = vadd.f32 %v1196, %v1374
        %v1387 = vadd.f32 %v1197, %v1376
        %v1388 = vadd.f32 %v1198, %v1303
        %v1389 = vadd.f32 %v1199, %v1305
        %v1390 = vadd.f32 %v1200, %v1380
        %v1391 = vadd.f32 %v1201, %v1382
        %s1392 = scalar_lea.vmem %s2, 96
        %v1393 = vld [vmem:[%s1392] sm:$0xff]
        %v1394 = vld [vmem:[%s1392 + $0x8] sm:$0xff]
        %1395 = vrot.lane.b32.xlu0 %v258, 47
        %v1396 = vpop.permute.xlu0 %1395
        %1397 = vrot.lane.b32.xlu0 %v259, 47
        %v1398 = vpop.permute.xlu0 %1397
        %1399 = vrot.lane.b32.xlu0 %v260, 47
        %v1400 = vpop.permute.xlu0 %1399
        %1401 = vrot.lane.b32.xlu0 %v261, 47
        %v1402 = vpop.permute.xlu0 %1401
        %1403 = vrot.lane.b32.xlu0 %v262, 47
        %v1404 = vpop.permute.xlu0 %1403
        %vm1405 = vcmask 384000
        %v1406 = vsel %vm1405, %v1396, %v1398
        %v1407 = vsel %vm1405, %v1398, %v1400
        %v1408 = vsel %vm1405, %v1400, %v1402
        %v1409 = vsel %vm1405, %v1402, %v1404
        %v1415 = vsel %vm292, %v1393, 0
        %v1418 = vsel %vm292, %v1394, 0
        %1420 = vmatprep.subr.mxu0 %v1407
        %1421 = vmatpush1.msra.mxu0 %v1406
        %1422 = vmatprep.subr.mxu0 0.0
        %1423 = vmatpush1.msra.mxu0 0.0
        %1424 = vmatprep.subr.mxu0 0.0
        %1425 = vmatpush1.msra.mxu0 0.0
        %1426 = vmatprep.subr.mxu0 0.0
        %1427 = vmatpush1.msra.mxu0 0.0
        %1428 = vmatprep.subr.mxu0 0.0
        %1429 = vmatpush1.msra.mxu0 0.0
        %1430 = vmatprep.subr.mxu0 0.0
        %1431 = vmatpush1.msra.mxu0 0.0
        %1432 = vmatprep.subr.mxu0 0.0
        %1433 = vmatpush1.msra.mxu0 0.0
        %1434 = vmatprep.subr.mxu0 0.0
        %1435 = vmatpush1.msra.mxu0 0.0
        %1436 = vmatprep.subr.mxu0 0.0
        %1437 = vmatpush1.msra.mxu0 0.0
        %1438 = vmatprep.subr.mxu0 0.0
        %1439 = vmatpush1.msra.mxu0 0.0
        %1440 = vmatprep.subr.mxu0 0.0
        %1441 = vmatpush1.msra.mxu0 0.0
        %1442 = vmatprep.subr.mxu0 0.0
        %1443 = vmatpush1.msra.mxu0 0.0
        %1444 = vmatprep.subr.mxu0 0.0
        %1445 = vmatpush1.msra.mxu0 0.0
        %1446 = vmatprep.subr.mxu0 0.0
        %1447 = vmatpush1.msra.mxu0 0.0
        %1448 = vmatprep.subr.mxu0 0.0
        %1449 = vmatpush1.msra.mxu0 0.0
        %1450 = vmatprep.subr.mxu0 0.0
        %1451 = vmatpush1.msra.mxu0 0.0
        %1452 = vmatprep.subr.mxu0 0.0
        %1453 = vmatpush1.msra.mxu0 0.0
        %1454 = vmatprep.subr.mxu0 0.0
        %1455 = vmatpush1.msra.mxu0 0.0
        %1456 = vmatprep.subr.mxu0 0.0
        %1457 = vmatpush1.msra.mxu0 0.0
        %1458 = vmatprep.subr.mxu0 0.0
        %1459 = vmatpush1.msra.mxu0 0.0
        %1460 = vmatprep.subr.mxu0 0.0
        %1461 = vmatpush1.msra.mxu0 0.0
        %1462 = vmatprep.subr.mxu0 0.0
        %1463 = vmatpush1.msra.mxu0 0.0
        %1464 = vmatprep.subr.mxu0 0.0
        %1465 = vmatpush1.msra.mxu0 0.0
        %1466 = vmatprep.subr.mxu0 0.0
        %1467 = vmatpush1.msra.mxu0 0.0
        %1468 = vmatprep.subr.mxu0 0.0
        %1469 = vmatpush1.msra.mxu0 0.0
        %1470 = vmatprep.subr.mxu0 0.0
        %1471 = vmatpush1.msra.mxu0 0.0
        %1472 = vmatprep.subr.mxu0 0.0
        %1473 = vmatpush1.msra.mxu0 0.0
        %1474 = vmatprep.subr.mxu0 0.0
        %1475 = vmatpush1.msra.mxu0 0.0
        %1476 = vmatprep.subr.mxu0 0.0
        %1477 = vmatpush1.msra.mxu0 0.0
        %1478 = vmatprep.subr.mxu0 0.0
        %1479 = vmatpush1.msra.mxu0 0.0
        %1480 = vmatprep.subr.mxu0 0.0
        %1481 = vmatpush1.msra.mxu0 0.0
        %1482 = vmatprep.subr.mxu0 0.0
        %1483 = vmatpush1.msra.mxu0 0.0
        %1484 = vmatprep.mubr.f32.mxu0 0.0
        %1485 = vmatmul.mubr.f32.gmra.mrb[0].mxu0 %v1415
        %v1486 = vpop.f32.mrb[0].mxu0
        %v1487 = vadd.f32 0.0, %v1486
        %v1488 = vpop.f32.mrb[0].mxu0
        %v1489 = vadd.f32 0.0, %v1488
        %1490 = vmatprep.mubr.f32.mxu0 0.0
        %1491 = vmatmul.mubr.f32.gmra.mrb[0].mxu0 %v1418
        %v1492 = vpop.f32.mrb[0].mxu0
        %v1493 = vadd.f32 0.0, %v1492
        %v1494 = vpop.f32.mrb[0].mxu0
        %v1495 = vadd.f32 0.0, %v1494
        %1496 = vdwg.mxu0
        %1497 = vmatprep.subr.mxu0 %v1409
        %1498 = vmatpush1.msra.mxu0 %v1408
        %1499 = vmatprep.subr.mxu0 0.0
        %1500 = vmatpush1.msra.mxu0 0.0
        %1501 = vmatprep.subr.mxu0 0.0
        %1502 = vmatpush1.msra.mxu0 0.0
        %1503 = vmatprep.subr.mxu0 0.0
        %1504 = vmatpush1.msra.mxu0 0.0
        %1505 = vmatprep.subr.mxu0 0.0
        %1506 = vmatpush1.msra.mxu0 0.0
        %1507 = vmatprep.subr.mxu0 0.0
        %1508 = vmatpush1.msra.mxu0 0.0
        %1509 = vmatprep.subr.mxu0 0.0
        %1510 = vmatpush1.msra.mxu0 0.0
        %1511 = vmatprep.subr.mxu0 0.0
        %1512 = vmatpush1.msra.mxu0 0.0
        %1513 = vmatprep.subr.mxu0 0.0
        %1514 = vmatpush1.msra.mxu0 0.0
        %1515 = vmatprep.subr.mxu0 0.0
        %1516 = vmatpush1.msra.mxu0 0.0
        %1517 = vmatprep.subr.mxu0 0.0
        %1518 = vmatpush1.msra.mxu0 0.0
        %1519 = vmatprep.subr.mxu0 0.0
        %1520 = vmatpush1.msra.mxu0 0.0
        %1521 = vmatprep.subr.mxu0 0.0
        %1522 = vmatpush1.msra.mxu0 0.0
        %1523 = vmatprep.subr.mxu0 0.0
        %1524 = vmatpush1.msra.mxu0 0.0
        %1525 = vmatprep.subr.mxu0 0.0
        %1526 = vmatpush1.msra.mxu0 0.0
        %1527 = vmatprep.subr.mxu0 0.0
        %1528 = vmatpush1.msra.mxu0 0.0
        %1529 = vmatprep.subr.mxu0 0.0
        %1530 = vmatpush1.msra.mxu0 0.0
        %1531 = vmatprep.subr.mxu0 0.0
        %1532 = vmatpush1.msra.mxu0 0.0
        %1533 = vmatprep.subr.mxu0 0.0
        %1534 = vmatpush1.msra.mxu0 0.0
        %1535 = vmatprep.subr.mxu0 0.0
        %1536 = vmatpush1.msra.mxu0 0.0
        %1537 = vmatprep.subr.mxu0 0.0
        %1538 = vmatpush1.msra.mxu0 0.0
        %1539 = vmatprep.subr.mxu0 0.0
        %1540 = vmatpush1.msra.mxu0 0.0
        %1541 = vmatprep.subr.mxu0 0.0
        %1542 = vmatpush1.msra.mxu0 0.0
        %1543 = vmatprep.subr.mxu0 0.0
        %1544 = vmatpush1.msra.mxu0 0.0
        %1545 = vmatprep.subr.mxu0 0.0
        %1546 = vmatpush1.msra.mxu0 0.0
        %1547 = vmatprep.subr.mxu0 0.0
        %1548 = vmatpush1.msra.mxu0 0.0
        %1549 = vmatprep.subr.mxu0 0.0
        %1550 = vmatpush1.msra.mxu0 0.0
        %1551 = vmatprep.subr.mxu0 0.0
        %1552 = vmatpush1.msra.mxu0 0.0
        %1553 = vmatprep.subr.mxu0 0.0
        %1554 = vmatpush1.msra.mxu0 0.0
        %1555 = vmatprep.subr.mxu0 0.0
        %1556 = vmatpush1.msra.mxu0 0.0
        %1557 = vmatprep.subr.mxu0 0.0
        %1558 = vmatpush1.msra.mxu0 0.0
        %1559 = vmatprep.subr.mxu0 0.0
        %1560 = vmatpush1.msra.mxu0 0.0
        %1561 = vmatprep.mubr.f32.mxu0 0.0
        %1562 = vmatmul.mubr.f32.gmra.mrb[0].mxu0 %v1415
        %v1563 = vpop.f32.mrb[0].mxu0
        %v1564 = vadd.f32 0.0, %v1563
        %v1565 = vpop.f32.mrb[0].mxu0
        %v1566 = vadd.f32 0.0, %v1565
        %1567 = vmatprep.mubr.f32.mxu0 0.0
        %1568 = vmatmul.mubr.f32.gmra.mrb[0].mxu0 %v1418
        %v1569 = vpop.f32.mrb[0].mxu0
        %v1570 = vadd.f32 0.0, %v1569
        %v1571 = vpop.f32.mrb[0].mxu0
        %v1572 = vadd.f32 0.0, %v1571
        %1573 = vdwg.mxu0
        %v1574 = vadd.f32 %v1384, %v1487
        %v1575 = vadd.f32 %v1385, %v1489
        %v1576 = vadd.f32 %v1386, %v1564
        %v1577 = vadd.f32 %v1387, %v1566
        %v1578 = vadd.f32 %v1388, %v1493
        %v1579 = vadd.f32 %v1389, %v1495
        %v1580 = vadd.f32 %v1390, %v1570
        %v1581 = vadd.f32 %v1391, %v1572
        %s1582 = scalar_lea.vmem %s2, 112
        %v1583 = vld [vmem:[%s1582] sm:$0xff]
        %v1584 = vld [vmem:[%s1582 + $0x8] sm:$0xff]
        %1585 = vrot.lane.b32.xlu0 %v258, 46
        %v1586 = vpop.permute.xlu0 %1585
        %1587 = vrot.lane.b32.xlu0 %v259, 46
        %v1588 = vpop.permute.xlu0 %1587
        %1589 = vrot.lane.b32.xlu0 %v260, 46
        %v1590 = vpop.permute.xlu0 %1589
        %1591 = vrot.lane.b32.xlu0 %v261, 46
        %v1592 = vpop.permute.xlu0 %1591
        %1593 = vrot.lane.b32.xlu0 %v262, 46
        %v1594 = vpop.permute.xlu0 %1593
        %vm1595 = vcmask 375808
        %v1596 = vsel %vm1595, %v1586, %v1588
        %v1597 = vsel %vm1595, %v1588, %v1590
        %v1598 = vsel %vm1595, %v1590, %v1592
        %v1599 = vsel %vm1595, %v1592, %v1594
        %v1605 = vsel %vm292, %v1583, 0
        %v1608 = vsel %vm292, %v1584, 0
        %1610 = vmatprep.subr.mxu0 %v1597
        %1611 = vmatpush1.msra.mxu0 %v1596
        %1612 = vmatprep.subr.mxu0 0.0
        %1613 = vmatpush1.msra.mxu0 0.0
        %1614 = vmatprep.subr.mxu0 0.0
        %1615 = vmatpush1.msra.mxu0 0.0
        %1616 = vmatprep.subr.mxu0 0.0
        %1617 = vmatpush1.msra.mxu0 0.0
        %1618 = vmatprep.subr.mxu0 0.0
        %1619 = vmatpush1.msra.mxu0 0.0
        %1620 = vmatprep.subr.mxu0 0.0
        %1621 = vmatpush1.msra.mxu0 0.0
        %1622 = vmatprep.subr.mxu0 0.0
        %1623 = vmatpush1.msra.mxu0 0.0
        %1624 = vmatprep.subr.mxu0 0.0
        %1625 = vmatpush1.msra.mxu0 0.0
        %1626 = vmatprep.subr.mxu0 0.0
        %1627 = vmatpush1.msra.mxu0 0.0
        %1628 = vmatprep.subr.mxu0 0.0
        %1629 = vmatpush1.msra.mxu0 0.0
        %1630 = vmatprep.subr.mxu0 0.0
        %1631 = vmatpush1.msra.mxu0 0.0
        %1632 = vmatprep.subr.mxu0 0.0
        %1633 = vmatpush1.msra.mxu0 0.0
        %1634 = vmatprep.subr.mxu0 0.0
        %1635 = vmatpush1.msra.mxu0 0.0
        %1636 = vmatprep.subr.mxu0 0.0
        %1637 = vmatpush1.msra.mxu0 0.0
        %1638 = vmatprep.subr.mxu0 0.0
        %1639 = vmatpush1.msra.mxu0 0.0
        %1640 = vmatprep.subr.mxu0 0.0
        %1641 = vmatpush1.msra.mxu0 0.0
        %1642 = vmatprep.subr.mxu0 0.0
        %1643 = vmatpush1.msra.mxu0 0.0
        %1644 = vmatprep.subr.mxu0 0.0
        %1645 = vmatpush1.msra.mxu0 0.0
        %1646 = vmatprep.subr.mxu0 0.0
        %1647 = vmatpush1.msra.mxu0 0.0
        %1648 = vmatprep.subr.mxu0 0.0
        %1649 = vmatpush1.msra.mxu0 0.0
        %1650 = vmatprep.subr.mxu0 0.0
        %1651 = vmatpush1.msra.mxu0 0.0
        %1652 = vmatprep.subr.mxu0 0.0
        %1653 = vmatpush1.msra.mxu0 0.0
        %1654 = vmatprep.subr.mxu0 0.0
        %1655 = vmatpush1.msra.mxu0 0.0
        %1656 = vmatprep.subr.mxu0 0.0
        %1657 = vmatpush1.msra.mxu0 0.0
        %1658 = vmatprep.subr.mxu0 0.0
        %1659 = vmatpush1.msra.mxu0 0.0
        %1660 = vmatprep.subr.mxu0 0.0
        %1661 = vmatpush1.msra.mxu0 0.0
        %1662 = vmatprep.subr.mxu0 0.0
        %1663 = vmatpush1.msra.mxu0 0.0
        %1664 = vmatprep.subr.mxu0 0.0
        %1665 = vmatpush1.msra.mxu0 0.0
        %1666 = vmatprep.subr.mxu0 0.0
        %1667 = vmatpush1.msra.mxu0 0.0
        %1668 = vmatprep.subr.mxu0 0.0
        %1669 = vmatpush1.msra.mxu0 0.0
        %1670 = vmatprep.subr.mxu0 0.0
        %1671 = vmatpush1.msra.mxu0 0.0
        %1672 = vmatprep.subr.mxu0 0.0
        %1673 = vmatpush1.msra.mxu0 0.0
        %1674 = vmatprep.mubr.f32.mxu0 0.0
        %1675 = vmatmul.mubr.f32.gmra.mrb[0].mxu0 %v1605
        %v1676 = vpop.f32.mrb[0].mxu0
        %v1677 = vadd.f32 0.0, %v1676
        %v1678 = vpop.f32.mrb[0].mxu0
        %v1679 = vadd.f32 0.0, %v1678
        %1680 = vmatprep.mubr.f32.mxu0 0.0
        %1681 = vmatmul.mubr.f32.gmra.mrb[0].mxu0 %v1608
        %v1682 = vpop.f32.mrb[0].mxu0
        %v1683 = vadd.f32 0.0, %v1682
        %v1684 = vpop.f32.mrb[0].mxu0
        %v1685 = vadd.f32 0.0, %v1684
        %1686 = vdwg.mxu0
        %1687 = vmatprep.subr.mxu0 %v1599
        %1688 = vmatpush1.msra.mxu0 %v1598
        %1689 = vmatprep.subr.mxu0 0.0
        %1690 = vmatpush1.msra.mxu0 0.0
        %1691 = vmatprep.subr.mxu0 0.0
        %1692 = vmatpush1.msra.mxu0 0.0
        %1693 = vmatprep.subr.mxu0 0.0
        %1694 = vmatpush1.msra.mxu0 0.0
        %1695 = vmatprep.subr.mxu0 0.0
        %1696 = vmatpush1.msra.mxu0 0.0
        %1697 = vmatprep.subr.mxu0 0.0
        %1698 = vmatpush1.msra.mxu0 0.0
        %1699 = vmatprep.subr.mxu0 0.0
        %1700 = vmatpush1.msra.mxu0 0.0
        %1701 = vmatprep.subr.mxu0 0.0
        %1702 = vmatpush1.msra.mxu0 0.0
        %1703 = vmatprep.subr.mxu0 0.0
        %1704 = vmatpush1.msra.mxu0 0.0
        %1705 = vmatprep.subr.mxu0 0.0
        %1706 = vmatpush1.msra.mxu0 0.0
        %1707 = vmatprep.subr.mxu0 0.0
        %1708 = vmatpush1.msra.mxu0 0.0
        %1709 = vmatprep.subr.mxu0 0.0
        %1710 = vmatpush1.msra.mxu0 0.0
        %1711 = vmatprep.subr.mxu0 0.0
        %1712 = vmatpush1.msra.mxu0 0.0
        %1713 = vmatprep.subr.mxu0 0.0
        %1714 = vmatpush1.msra.mxu0 0.0
        %1715 = vmatprep.subr.mxu0 0.0
        %1716 = vmatpush1.msra.mxu0 0.0
        %1717 = vmatprep.subr.mxu0 0.0
        %1718 = vmatpush1.msra.mxu0 0.0
        %1719 = vmatprep.subr.mxu0 0.0
        %1720 = vmatpush1.msra.mxu0 0.0
        %1721 = vmatprep.subr.mxu0 0.0
        %1722 = vmatpush1.msra.mxu0 0.0
        %1723 = vmatprep.subr.mxu0 0.0
        %1724 = vmatpush1.msra.mxu0 0.0
        %1725 = vmatprep.subr.mxu0 0.0
        %1726 = vmatpush1.msra.mxu0 0.0
        %1727 = vmatprep.subr.mxu0 0.0
        %1728 = vmatpush1.msra.mxu0 0.0
        %1729 = vmatprep.subr.mxu0 0.0
        %1730 = vmatpush1.msra.mxu0 0.0
        %1731 = vmatprep.subr.mxu0 0.0
        %1732 = vmatpush1.msra.mxu0 0.0
        %1733 = vmatprep.subr.mxu0 0.0
        %1734 = vmatpush1.msra.mxu0 0.0
        %1735 = vmatprep.subr.mxu0 0.0
        %1736 = vmatpush1.msra.mxu0 0.0
        %1737 = vmatprep.subr.mxu0 0.0
        %1738 = vmatpush1.msra.mxu0 0.0
        %1739 = vmatprep.subr.mxu0 0.0
        %1740 = vmatpush1.msra.mxu0 0.0
        %1741 = vmatprep.subr.mxu0 0.0
        %1742 = vmatpush1.msra.mxu0 0.0
        %1743 = vmatprep.subr.mxu0 0.0
        %1744 = vmatpush1.msra.mxu0 0.0
        %1745 = vmatprep.subr.mxu0 0.0
        %1746 = vmatpush1.msra.mxu0 0.0
        %1747 = vmatprep.subr.mxu0 0.0
        %1748 = vmatpush1.msra.mxu0 0.0
        %1749 = vmatprep.subr.mxu0 0.0
        %1750 = vmatpush1.msra.mxu0 0.0
        %1751 = vmatprep.mubr.f32.mxu0 0.0
        %1752 = vmatmul.mubr.f32.gmra.mrb[0].mxu0 %v1605
        %v1753 = vpop.f32.mrb[0].mxu0
        %v1754 = vadd.f32 0.0, %v1753
        %v1755 = vpop.f32.mrb[0].mxu0
        %v1756 = vadd.f32 0.0, %v1755
        %1757 = vmatprep.mubr.f32.mxu0 0.0
        %1758 = vmatmul.mubr.f32.gmra.mrb[0].mxu0 %v1608
        %v1759 = vpop.f32.mrb[0].mxu0
        %v1760 = vadd.f32 0.0, %v1759
        %v1761 = vpop.f32.mrb[0].mxu0
        %v1762 = vadd.f32 0.0, %v1761
        %1763 = vdwg.mxu0
        %v1764 = vadd.f32 %v1574, %v1677
        %v1765 = vadd.f32 %v1575, %v1679
        %v1766 = vadd.f32 %v1576, %v1754
        %v1767 = vadd.f32 %v1577, %v1756
        %v1768 = vadd.f32 %v1578, %v1683
        %v1769 = vadd.f32 %v1579, %v1685
        %v1770 = vadd.f32 %v1580, %v1760
        %v1771 = vadd.f32 %v1581, %v1762
        %s1772 = scalar_lea.vmem %s2, 128
        %v1773 = vld [vmem:[%s1772] sm:$0xff]
        %v1774 = vld [vmem:[%s1772 + $0x8] sm:$0xff]
        %1775 = vrot.lane.b32.xlu0 %v258, 45
        %v1776 = vpop.permute.xlu0 %1775
        %1777 = vrot.lane.b32.xlu0 %v259, 45
        %v1778 = vpop.permute.xlu0 %1777
        %1779 = vrot.lane.b32.xlu0 %v260, 45
        %v1780 = vpop.permute.xlu0 %1779
        %1781 = vrot.lane.b32.xlu0 %v261, 45
        %v1782 = vpop.permute.xlu0 %1781
        %1783 = vrot.lane.b32.xlu0 %v262, 45
        %v1784 = vpop.permute.xlu0 %1783
        %vm1785 = vcmask 367616
        %v1786 = vsel %vm1785, %v1776, %v1778
        %v1787 = vsel %vm1785, %v1778, %v1780
        %v1788 = vsel %vm1785, %v1780, %v1782
        %v1789 = vsel %vm1785, %v1782, %v1784
        %v1795 = vsel %vm292, %v1773, 0
        %v1798 = vsel %vm292, %v1774, 0
        %1800 = vmatprep.subr.mxu0 %v1787
        %1801 = vmatpush1.msra.mxu0 %v1786
        %1802 = vmatprep.subr.mxu0 0.0
        %1803 = vmatpush1.msra.mxu0 0.0
        %1804 = vmatprep.subr.mxu0 0.0
        %1805 = vmatpush1.msra.mxu0 0.0
        %1806 = vmatprep.subr.mxu0 0.0
        %1807 = vmatpush1.msra.mxu0 0.0
        %1808 = vmatprep.subr.mxu0 0.0
        %1809 = vmatpush1.msra.mxu0 0.0
        %1810 = vmatprep.subr.mxu0 0.0
        %1811 = vmatpush1.msra.mxu0 0.0
        %1812 = vmatprep.subr.mxu0 0.0
        %1813 = vmatpush1.msra.mxu0 0.0
        %1814 = vmatprep.subr.mxu0 0.0
        %1815 = vmatpush1.msra.mxu0 0.0
        %1816 = vmatprep.subr.mxu0 0.0
        %1817 = vmatpush1.msra.mxu0 0.0
        %1818 = vmatprep.subr.mxu0 0.0
        %1819 = vmatpush1.msra.mxu0 0.0
        %1820 = vmatprep.subr.mxu0 0.0
        %1821 = vmatpush1.msra.mxu0 0.0
        %1822 = vmatprep.subr.mxu0 0.0
        %1823 = vmatpush1.msra.mxu0 0.0
        %1824 = vmatprep.subr.mxu0 0.0
        %1825 = vmatpush1.msra.mxu0 0.0
        %1826 = vmatprep.subr.mxu0 0.0
        %1827 = vmatpush1.msra.mxu0 0.0
        %1828 = vmatprep.subr.mxu0 0.0
        %1829 = vmatpush1.msra.mxu0 0.0
        %1830 = vmatprep.subr.mxu0 0.0
        %1831 = vmatpush1.msra.mxu0 0.0
        %1832 = vmatprep.subr.mxu0 0.0
        %1833 = vmatpush1.msra.mxu0 0.0
        %1834 = vmatprep.subr.mxu0 0.0
        %1835 = vmatpush1.msra.mxu0 0.0
        %1836 = vmatprep.subr.mxu0 0.0
        %1837 = vmatpush1.msra.mxu0 0.0
        %1838 = vmatprep.subr.mxu0 0.0
        %1839 = vmatpush1.msra.mxu0 0.0
        %1840 = vmatprep.subr.mxu0 0.0
        %1841 = vmatpush1.msra.mxu0 0.0
        %1842 = vmatprep.subr.mxu0 0.0
        %1843 = vmatpush1.msra.mxu0 0.0
        %1844 = vmatprep.subr.mxu0 0.0
        %1845 = vmatpush1.msra.mxu0 0.0
        %1846 = vmatprep.subr.mxu0 0.0
        %1847 = vmatpush1.msra.mxu0 0.0
        %1848 = vmatprep.subr.mxu0 0.0
        %1849 = vmatpush1.msra.mxu0 0.0
        %1850 = vmatprep.subr.mxu0 0.0
        %1851 = vmatpush1.msra.mxu0 0.0
        %1852 = vmatprep.subr.mxu0 0.0
        %1853 = vmatpush1.msra.mxu0 0.0
        %1854 = vmatprep.subr.mxu0 0.0
        %1855 = vmatpush1.msra.mxu0 0.0
        %1856 = vmatprep.subr.mxu0 0.0
        %1857 = vmatpush1.msra.mxu0 0.0
        %1858 = vmatprep.subr.mxu0 0.0
        %1859 = vmatpush1.msra.mxu0 0.0
        %1860 = vmatprep.subr.mxu0 0.0
        %1861 = vmatpush1.msra.mxu0 0.0
        %1862 = vmatprep.subr.mxu0 0.0
        %1863 = vmatpush1.msra.mxu0 0.0
        %1864 = vmatprep.mubr.f32.mxu0 0.0
        %1865 = vmatmul.mubr.f32.gmra.mrb[0].mxu0 %v1795
        %v1866 = vpop.f32.mrb[0].mxu0
        %v1867 = vadd.f32 0.0, %v1866
        %v1868 = vpop.f32.mrb[0].mxu0
        %v1869 = vadd.f32 0.0, %v1868
        %1870 = vmatprep.mubr.f32.mxu0 0.0
        %1871 = vmatmul.mubr.f32.gmra.mrb[0].mxu0 %v1798
        %v1872 = vpop.f32.mrb[0].mxu0
        %v1873 = vadd.f32 0.0, %v1872
        %v1874 = vpop.f32.mrb[0].mxu0
        %v1875 = vadd.f32 0.0, %v1874
        %1876 = vdwg.mxu0
        %1877 = vmatprep.subr.mxu0 %v1789
        %1878 = vmatpush1.msra.mxu0 %v1788
        %1879 = vmatprep.subr.mxu0 0.0
        %1880 = vmatpush1.msra.mxu0 0.0
        %1881 = vmatprep.subr.mxu0 0.0
        %1882 = vmatpush1.msra.mxu0 0.0
        %1883 = vmatprep.subr.mxu0 0.0
        %1884 = vmatpush1.msra.mxu0 0.0
        %1885 = vmatprep.subr.mxu0 0.0
        %1886 = vmatpush1.msra.mxu0 0.0
        %1887 = vmatprep.subr.mxu0 0.0
        %1888 = vmatpush1.msra.mxu0 0.0
        %1889 = vmatprep.subr.mxu0 0.0
        %1890 = vmatpush1.msra.mxu0 0.0
        %1891 = vmatprep.subr.mxu0 0.0
        %1892 = vmatpush1.msra.mxu0 0.0
        %1893 = vmatprep.subr.mxu0 0.0
        %1894 = vmatpush1.msra.mxu0 0.0
        %1895 = vmatprep.subr.mxu0 0.0
        %1896 = vmatpush1.msra.mxu0 0.0
        %1897 = vmatprep.subr.mxu0 0.0
        %1898 = vmatpush1.msra.mxu0 0.0
        %1899 = vmatprep.subr.mxu0 0.0
        %1900 = vmatpush1.msra.mxu0 0.0
        %1901 = vmatprep.subr.mxu0 0.0
        %1902 = vmatpush1.msra.mxu0 0.0
        %1903 = vmatprep.subr.mxu0 0.0
        %1904 = vmatpush1.msra.mxu0 0.0
        %1905 = vmatprep.subr.mxu0 0.0
        %1906 = vmatpush1.msra.mxu0 0.0
        %1907 = vmatprep.subr.mxu0 0.0
        %1908 = vmatpush1.msra.mxu0 0.0
        %1909 = vmatprep.subr.mxu0 0.0
        %1910 = vmatpush1.msra.mxu0 0.0
        %1911 = vmatprep.subr.mxu0 0.0
        %1912 = vmatpush1.msra.mxu0 0.0
        %1913 = vmatprep.subr.mxu0 0.0
        %1914 = vmatpush1.msra.mxu0 0.0
        %1915 = vmatprep.subr.mxu0 0.0
        %1916 = vmatpush1.msra.mxu0 0.0
        %1917 = vmatprep.subr.mxu0 0.0
        %1918 = vmatpush1.msra.mxu0 0.0
        %1919 = vmatprep.subr.mxu0 0.0
        %1920 = vmatpush1.msra.mxu0 0.0
        %1921 = vmatprep.subr.mxu0 0.0
        %1922 = vmatpush1.msra.mxu0 0.0
        %1923 = vmatprep.subr.mxu0 0.0
        %1924 = vmatpush1.msra.mxu0 0.0
        %1925 = vmatprep.subr.mxu0 0.0
        %1926 = vmatpush1.msra.mxu0 0.0
        %1927 = vmatprep.subr.mxu0 0.0
        %1928 = vmatpush1.msra.mxu0 0.0
        %1929 = vmatprep.subr.mxu0 0.0
        %1930 = vmatpush1.msra.mxu0 0.0
        %1931 = vmatprep.subr.mxu0 0.0
        %1932 = vmatpush1.msra.mxu0 0.0
        %1933 = vmatprep.subr.mxu0 0.0
        %1934 = vmatpush1.msra.mxu0 0.0
        %1935 = vmatprep.subr.mxu0 0.0
        %1936 = vmatpush1.msra.mxu0 0.0
        %1937 = vmatprep.subr.mxu0 0.0
        %1938 = vmatpush1.msra.mxu0 0.0
        %1939 = vmatprep.subr.mxu0 0.0
        %1940 = vmatpush1.msra.mxu0 0.0
        %1941 = vmatprep.mubr.f32.mxu0 0.0
        %1942 = vmatmul.mubr.f32.gmra.mrb[0].mxu0 %v1795
        %v1943 = vpop.f32.mrb[0].mxu0
        %v1944 = vadd.f32 0.0, %v1943
        %v1945 = vpop.f32.mrb[0].mxu0
        %v1946 = vadd.f32 0.0, %v1945
        %1947 = vmatprep.mubr.f32.mxu0 0.0
        %1948 = vmatmul.mubr.f32.gmra.mrb[0].mxu0 %v1798
        %v1949 = vpop.f32.mrb[0].mxu0
        %v1950 = vadd.f32 0.0, %v1949
        %v1951 = vpop.f32.mrb[0].mxu0
        %v1952 = vadd.f32 0.0, %v1951
        %1953 = vdwg.mxu0
        %v1954 = vadd.f32 %v1764, %v1867
        %v1955 = vadd.f32 %v1765, %v1869
        %v1956 = vadd.f32 %v1766, %v1944
        %v1957 = vadd.f32 %v1767, %v1946
        %v1958 = vadd.f32 %v1768, %v1873
        %v1959 = vadd.f32 %v1769, %v1875
        %v1960 = vadd.f32 %v1770, %v1950
        %v1961 = vadd.f32 %v1771, %v1952
        %1963 = vset.pattern.permute.xlu0 0
        %1964 = vperm.xlu0 %1963, %v253
        %v1965 = vpop.permute.xlu0 %1964
        %1968 = vset.pattern.permute.xlu0 0
        %1969 = vperm.xlu0 %1968, %v254
        %v1970 = vpop.permute.xlu0 %1969
        %v1972 = vadd.f32 %v1954, %v1965
        %v1973 = vadd.f32 %v1955, %v1965
        %v1974 = vadd.f32 %v1956, %v1965
        %v1975 = vadd.f32 %v1957, %v1965
        %v1976 = vadd.f32 %v1958, %v1970
        %v1977 = vadd.f32 %v1959, %v1970
        %v1978 = vadd.f32 %v1960, %v1970
        %v1979 = vadd.f32 %v1961, %v1970
        %v1980 = vmax.f32 %v1972, 0.0
        %v1981 = vmax.f32 %v1973, 0.0
        %v1982 = vmax.f32 %v1974, 0.0
        %v1983 = vmax.f32 %v1975, 0.0
        %v1984 = vmax.f32 %v1976, 0.0
        %v1985 = vmax.f32 %v1977, 0.0
        %v1986 = vmax.f32 %v1978, 0.0
        %v1987 = vmax.f32 %v1979, 0.0
        %v1989 = vlaneseq
        %v1990 = vshrl.u32 %v1989, 7
        %v1991 = vsub.s32 0, %v1990
        %v1992 = vrot.slane %v252, %v1991
        %v1993 = vlaneseq
        %v1994 = vshrl.u32 %v1993, 7
        %v1995 = vsub.s32 1, %v1994
        %v1996 = vrot.slane %v252, %v1995
        %v1997 = vlaneseq
        %v1998 = vshrl.u32 %v1997, 7
        %v1999 = vsub.s32 2, %v1998
        %v2000 = vrot.slane %v252, %v1999
        %v2001 = vlaneseq
        %v2002 = vshrl.u32 %v2001, 7
        %v2003 = vsub.s32 3, %v2002
        %v2004 = vrot.slane %v252, %v2003
        %v2009 = vmul.f32 %v1980, %v1992
        %v2010 = vmul.f32 %v1981, %v1996
        %v2011 = vmul.f32 %v1982, %v2000
        %v2012 = vmul.f32 %v1983, %v2004
        %v2013 = vmul.f32 %v1984, %v1992
        %v2014 = vmul.f32 %v1985, %v1996
        %v2015 = vmul.f32 %v1986, %v2000
        %v2016 = vmul.f32 %v1987, %v2004
        %vm2017 = vcmask 130048
        %v2019 = vsel %vm2017, %v256, 0
        %v2022 = vsel %vm2017, %v257, 0
        %2024 = vmatprep.subr.mxu0 %v2010
        %2025 = vmatpush1.msra.mxu0 %v2009
        %2026 = vmatprep.subr.mxu0 %v2014
        %2027 = vmatpush1.msra.mxu0 %v2013
        %2028 = vmatprep.subr.mxu0 0.0
        %2029 = vmatpush1.msra.mxu0 0.0
        %2030 = vmatprep.subr.mxu0 0.0
        %2031 = vmatpush1.msra.mxu0 0.0
        %2032 = vmatprep.subr.mxu0 0.0
        %2033 = vmatpush1.msra.mxu0 0.0
        %2034 = vmatprep.subr.mxu0 0.0
        %2035 = vmatpush1.msra.mxu0 0.0
        %2036 = vmatprep.subr.mxu0 0.0
        %2037 = vmatpush1.msra.mxu0 0.0
        %2038 = vmatprep.subr.mxu0 0.0
        %2039 = vmatpush1.msra.mxu0 0.0
        %2040 = vmatprep.subr.mxu0 0.0
        %2041 = vmatpush1.msra.mxu0 0.0
        %2042 = vmatprep.subr.mxu0 0.0
        %2043 = vmatpush1.msra.mxu0 0.0
        %2044 = vmatprep.subr.mxu0 0.0
        %2045 = vmatpush1.msra.mxu0 0.0
        %2046 = vmatprep.subr.mxu0 0.0
        %2047 = vmatpush1.msra.mxu0 0.0
        %2048 = vmatprep.subr.mxu0 0.0
        %2049 = vmatpush1.msra.mxu0 0.0
        %2050 = vmatprep.subr.mxu0 0.0
        %2051 = vmatpush1.msra.mxu0 0.0
        %2052 = vmatprep.subr.mxu0 0.0
        %2053 = vmatpush1.msra.mxu0 0.0
        %2054 = vmatprep.subr.mxu0 0.0
        %2055 = vmatpush1.msra.mxu0 0.0
        %2056 = vmatprep.subr.mxu0 0.0
        %2057 = vmatpush1.msra.mxu0 0.0
        %2058 = vmatprep.subr.mxu0 0.0
        %2059 = vmatpush1.msra.mxu0 0.0
        %2060 = vmatprep.subr.mxu0 0.0
        %2061 = vmatpush1.msra.mxu0 0.0
        %2062 = vmatprep.subr.mxu0 0.0
        %2063 = vmatpush1.msra.mxu0 0.0
        %2064 = vmatprep.subr.mxu0 0.0
        %2065 = vmatpush1.msra.mxu0 0.0
        %2066 = vmatprep.subr.mxu0 0.0
        %2067 = vmatpush1.msra.mxu0 0.0
        %2068 = vmatprep.subr.mxu0 0.0
        %2069 = vmatpush1.msra.mxu0 0.0
        %2070 = vmatprep.subr.mxu0 0.0
        %2071 = vmatpush1.msra.mxu0 0.0
        %2072 = vmatprep.subr.mxu0 0.0
        %2073 = vmatpush1.msra.mxu0 0.0
        %2074 = vmatprep.subr.mxu0 0.0
        %2075 = vmatpush1.msra.mxu0 0.0
        %2076 = vmatprep.subr.mxu0 0.0
        %2077 = vmatpush1.msra.mxu0 0.0
        %2078 = vmatprep.subr.mxu0 0.0
        %2079 = vmatpush1.msra.mxu0 0.0
        %2080 = vmatprep.subr.mxu0 0.0
        %2081 = vmatpush1.msra.mxu0 0.0
        %2082 = vmatprep.subr.mxu0 0.0
        %2083 = vmatpush1.msra.mxu0 0.0
        %2084 = vmatprep.subr.mxu0 0.0
        %2085 = vmatpush1.msra.mxu0 0.0
        %2086 = vmatprep.subr.mxu0 0.0
        %2087 = vmatpush1.msra.mxu0 0.0
        %2088 = vmatprep.mubr.f32.mxu0 0.0
        %2089 = vmatmul.mubr.f32.gmra.mrb[0].mxu0 %v2019
        %v2090 = vpop.f32.mrb[0].mxu0
        %v2091 = vadd.f32 0.0, %v2090
        %v2092 = vpop.f32.mrb[0].mxu0
        %v2093 = vadd.f32 0.0, %v2092
        %2094 = vmatprep.mubr.f32.mxu0 0.0
        %2095 = vmatmul.mubr.f32.gmra.mrb[0].mxu0 %v2022
        %v2096 = vpop.f32.mrb[0].mxu0
        %v2097 = vadd.f32 0.0, %v2096
        %v2098 = vpop.f32.mrb[0].mxu0
        %v2099 = vadd.f32 0.0, %v2098
        %2100 = vdwg.mxu0
        %2101 = vmatprep.subr.mxu0 %v2012
        %2102 = vmatpush1.msra.mxu0 %v2011
        %2103 = vmatprep.subr.mxu0 %v2016
        %2104 = vmatpush1.msra.mxu0 %v2015
        %2105 = vmatprep.subr.mxu0 0.0
        %2106 = vmatpush1.msra.mxu0 0.0
        %2107 = vmatprep.subr.mxu0 0.0
        %2108 = vmatpush1.msra.mxu0 0.0
        %2109 = vmatprep.subr.mxu0 0.0
        %2110 = vmatpush1.msra.mxu0 0.0
        %2111 = vmatprep.subr.mxu0 0.0
        %2112 = vmatpush1.msra.mxu0 0.0
        %2113 = vmatprep.subr.mxu0 0.0
        %2114 = vmatpush1.msra.mxu0 0.0
        %2115 = vmatprep.subr.mxu0 0.0
        %2116 = vmatpush1.msra.mxu0 0.0
        %2117 = vmatprep.subr.mxu0 0.0
        %2118 = vmatpush1.msra.mxu0 0.0
        %2119 = vmatprep.subr.mxu0 0.0
        %2120 = vmatpush1.msra.mxu0 0.0
        %2121 = vmatprep.subr.mxu0 0.0
        %2122 = vmatpush1.msra.mxu0 0.0
        %2123 = vmatprep.subr.mxu0 0.0
        %2124 = vmatpush1.msra.mxu0 0.0
        %2125 = vmatprep.subr.mxu0 0.0
        %2126 = vmatpush1.msra.mxu0 0.0
        %2127 = vmatprep.subr.mxu0 0.0
        %2128 = vmatpush1.msra.mxu0 0.0
        %2129 = vmatprep.subr.mxu0 0.0
        %2130 = vmatpush1.msra.mxu0 0.0
        %2131 = vmatprep.subr.mxu0 0.0
        %2132 = vmatpush1.msra.mxu0 0.0
        %2133 = vmatprep.subr.mxu0 0.0
        %2134 = vmatpush1.msra.mxu0 0.0
        %2135 = vmatprep.subr.mxu0 0.0
        %2136 = vmatpush1.msra.mxu0 0.0
        %2137 = vmatprep.subr.mxu0 0.0
        %2138 = vmatpush1.msra.mxu0 0.0
        %2139 = vmatprep.subr.mxu0 0.0
        %2140 = vmatpush1.msra.mxu0 0.0
        %2141 = vmatprep.subr.mxu0 0.0
        %2142 = vmatpush1.msra.mxu0 0.0
        %2143 = vmatprep.subr.mxu0 0.0
        %2144 = vmatpush1.msra.mxu0 0.0
        %2145 = vmatprep.subr.mxu0 0.0
        %2146 = vmatpush1.msra.mxu0 0.0
        %2147 = vmatprep.subr.mxu0 0.0
        %2148 = vmatpush1.msra.mxu0 0.0
        %2149 = vmatprep.subr.mxu0 0.0
        %2150 = vmatpush1.msra.mxu0 0.0
        %2151 = vmatprep.subr.mxu0 0.0
        %2152 = vmatpush1.msra.mxu0 0.0
        %2153 = vmatprep.subr.mxu0 0.0
        %2154 = vmatpush1.msra.mxu0 0.0
        %2155 = vmatprep.subr.mxu0 0.0
        %2156 = vmatpush1.msra.mxu0 0.0
        %2157 = vmatprep.subr.mxu0 0.0
        %2158 = vmatpush1.msra.mxu0 0.0
        %2159 = vmatprep.subr.mxu0 0.0
        %2160 = vmatpush1.msra.mxu0 0.0
        %2161 = vmatprep.subr.mxu0 0.0
        %2162 = vmatpush1.msra.mxu0 0.0
        %2163 = vmatprep.subr.mxu0 0.0
        %2164 = vmatpush1.msra.mxu0 0.0
        %2165 = vmatprep.mubr.f32.mxu0 0.0
        %2166 = vmatmul.mubr.f32.gmra.mrb[0].mxu0 %v2019
        %v2167 = vpop.f32.mrb[0].mxu0
        %v2168 = vadd.f32 0.0, %v2167
        %v2169 = vpop.f32.mrb[0].mxu0
        %v2170 = vadd.f32 0.0, %v2169
        %2171 = vmatprep.mubr.f32.mxu0 0.0
        %2172 = vmatmul.mubr.f32.gmra.mrb[0].mxu0 %v2022
        %v2173 = vpop.f32.mrb[0].mxu0
        %v2174 = vadd.f32 0.0, %v2173
        %v2175 = vpop.f32.mrb[0].mxu0
        %v2176 = vadd.f32 0.0, %v2175
        %2177 = vdwg.mxu0
        %v2182 = vrot.slane %v2091, 1
        %v2183 = vrot.slane %v2093, 1
        %v2184 = vrot.slane %v2168, 1
        %v2185 = vrot.slane %v2170, 1
        %2186 = vrot.lane.b32.xlu0 %v2182, 127
        %v2187 = vpop.permute.xlu0 %2186
        %2188 = vrot.lane.b32.xlu0 %v2183, 127
        %v2189 = vpop.permute.xlu0 %2188
        %2190 = vrot.lane.b32.xlu0 %v2184, 127
        %v2191 = vpop.permute.xlu0 %2190
        %2192 = vrot.lane.b32.xlu0 %v2185, 127
        %v2193 = vpop.permute.xlu0 %2192
        %vm2194 = vcmask 1039360
        %v2195 = vsel %vm2194, %v2187, %v2189
        %v2196 = vsel %vm2194, %v2189, %v2191
        %v2197 = vsel %vm2194, %v2191, %v2193
        %v2202 = vadd.f32 %v2091, %v2195
        %v2203 = vadd.f32 %v2093, %v2196
        %v2204 = vadd.f32 %v2168, %v2197
        %v2205 = vadd.f32 %v2170, %v2193
        %v2206 = vrot.slane %v2091, 2
        %v2207 = vrot.slane %v2093, 2
        %v2208 = vrot.slane %v2168, 2
        %v2209 = vrot.slane %v2170, 2
        %2210 = vrot.lane.b32.xlu0 %v2206, 126
        %v2211 = vpop.permute.xlu0 %2210
        %2212 = vrot.lane.b32.xlu0 %v2207, 126
        %v2213 = vpop.permute.xlu0 %2212
        %2214 = vrot.lane.b32.xlu0 %v2208, 126
        %v2215 = vpop.permute.xlu0 %2214
        %2216 = vrot.lane.b32.xlu0 %v2209, 126
        %v2217 = vpop.permute.xlu0 %2216
        %vm2218 = vcmask 1031168
        %v2219 = vsel %vm2218, %v2211, %v2213
        %v2220 = vsel %vm2218, %v2213, %v2215
        %v2221 = vsel %vm2218, %v2215, %v2217
        %v2226 = vadd.f32 %v2202, %v2219
        %v2227 = vadd.f32 %v2203, %v2220
        %v2228 = vadd.f32 %v2204, %v2221
        %v2229 = vadd.f32 %v2205, %v2217
        %v2230 = vrot.slane %v2091, 3
        %v2231 = vrot.slane %v2093, 3
        %v2232 = vrot.slane %v2168, 3
        %v2233 = vrot.slane %v2170, 3
        %2234 = vrot.lane.b32.xlu0 %v2230, 110
        %v2235 = vpop.permute.xlu0 %2234
        %2236 = vrot.lane.b32.xlu0 %v2231, 110
        %v2237 = vpop.permute.xlu0 %2236
        %2238 = vrot.lane.b32.xlu0 %v2232, 110
        %v2239 = vpop.permute.xlu0 %2238
        %2240 = vrot.lane.b32.xlu0 %v2233, 110
        %v2241 = vpop.permute.xlu0 %2240
        %vm2242 = vcmask 900096
        %v2243 = vsel %vm2242, %v2235, %v2237
        %v2244 = vsel %vm2242, %v2237, %v2239
        %v2245 = vsel %vm2242, %v2239, %v2241
        %v2250 = vadd.f32 %v2226, %v2243
        %v2251 = vadd.f32 %v2227, %v2244
        %v2252 = vadd.f32 %v2228, %v2245
        %v2253 = vadd.f32 %v2229, %v2241
        %v2254 = vrot.slane %v2091, 4
        %v2255 = vrot.slane %v2093, 4
        %v2256 = vrot.slane %v2168, 4
        %v2257 = vrot.slane %v2170, 4
        %2258 = vrot.lane.b32.xlu0 %v2254, 109
        %v2259 = vpop.permute.xlu0 %2258
        %2260 = vrot.lane.b32.xlu0 %v2255, 109
        %v2261 = vpop.permute.xlu0 %2260
        %2262 = vrot.lane.b32.xlu0 %v2256, 109
        %v2263 = vpop.permute.xlu0 %2262
        %2264 = vrot.lane.b32.xlu0 %v2257, 109
        %v2265 = vpop.permute.xlu0 %2264
        %vm2266 = vcmask 891904
        %v2267 = vsel %vm2266, %v2259, %v2261
        %v2268 = vsel %vm2266, %v2261, %v2263
        %v2269 = vsel %vm2266, %v2263, %v2265
        %v2274 = vadd.f32 %v2250, %v2267
        %v2275 = vadd.f32 %v2251, %v2268
        %v2276 = vadd.f32 %v2252, %v2269
        %v2277 = vadd.f32 %v2253, %v2265
        %v2278 = vrot.slane %v2091, 5
        %v2279 = vrot.slane %v2093, 5
        %v2280 = vrot.slane %v2168, 5
        %v2281 = vrot.slane %v2170, 5
        %2282 = vrot.lane.b32.xlu0 %v2278, 108
        %v2283 = vpop.permute.xlu0 %2282
        %2284 = vrot.lane.b32.xlu0 %v2279, 108
        %v2285 = vpop.permute.xlu0 %2284
        %2286 = vrot.lane.b32.xlu0 %v2280, 108
        %v2287 = vpop.permute.xlu0 %2286
        %2288 = vrot.lane.b32.xlu0 %v2281, 108
        %v2289 = vpop.permute.xlu0 %2288
        %vm2290 = vcmask 883712
        %v2291 = vsel %vm2290, %v2283, %v2285
        %v2292 = vsel %vm2290, %v2285, %v2287
        %v2293 = vsel %vm2290, %v2287, %v2289
        %v2298 = vadd.f32 %v2274, %v2291
        %v2299 = vadd.f32 %v2275, %v2292
        %v2300 = vadd.f32 %v2276, %v2293
        %v2301 = vadd.f32 %v2277, %v2289
        %v2302 = vrot.slane %v2091, 6
        %v2303 = vrot.slane %v2093, 6
        %v2304 = vrot.slane %v2168, 6
        %v2305 = vrot.slane %v2170, 6
        %2306 = vrot.lane.b32.xlu0 %v2302, 92
        %v2307 = vpop.permute.xlu0 %2306
        %2308 = vrot.lane.b32.xlu0 %v2303, 92
        %v2309 = vpop.permute.xlu0 %2308
        %2310 = vrot.lane.b32.xlu0 %v2304, 92
        %v2311 = vpop.permute.xlu0 %2310
        %2312 = vrot.lane.b32.xlu0 %v2305, 92
        %v2313 = vpop.permute.xlu0 %2312
        %vm2314 = vcmask 752640
        %v2315 = vsel %vm2314, %v2307, %v2309
        %v2316 = vsel %vm2314, %v2309, %v2311
        %v2317 = vsel %vm2314, %v2311, %v2313
        %v2322 = vadd.f32 %v2298, %v2315
        %v2323 = vadd.f32 %v2299, %v2316
        %v2324 = vadd.f32 %v2300, %v2317
        %v2325 = vadd.f32 %v2301, %v2313
        %v2326 = vrot.slane %v2091, 7
        %v2327 = vrot.slane %v2093, 7
        %v2328 = vrot.slane %v2168, 7
        %v2329 = vrot.slane %v2170, 7
        %2330 = vrot.lane.b32.xlu0 %v2326, 91
        %v2331 = vpop.permute.xlu0 %2330
        %2332 = vrot.lane.b32.xlu0 %v2327, 91
        %v2333 = vpop.permute.xlu0 %2332
        %2334 = vrot.lane.b32.xlu0 %v2328, 91
        %v2335 = vpop.permute.xlu0 %2334
        %2336 = vrot.lane.b32.xlu0 %v2329, 91
        %v2337 = vpop.permute.xlu0 %2336
        %vm2338 = vcmask 744448
        %v2339 = vsel %vm2338, %v2331, %v2333
        %v2340 = vsel %vm2338, %v2333, %v2335
        %v2341 = vsel %vm2338, %v2335, %v2337
        %v2346 = vadd.f32 %v2322, %v2339
        %v2347 = vadd.f32 %v2323, %v2340
        %v2348 = vadd.f32 %v2324, %v2341
        %v2349 = vadd.f32 %v2325, %v2337
        %2354 = vrot.lane.b32.xlu0 %v2097, 90
        %v2355 = vpop.permute.xlu0 %2354
        %2356 = vrot.lane.b32.xlu0 %v2099, 90
        %v2357 = vpop.permute.xlu0 %2356
        %2358 = vrot.lane.b32.xlu0 %v2174, 90
        %v2359 = vpop.permute.xlu0 %2358
        %2360 = vrot.lane.b32.xlu0 %v2176, 90
        %v2361 = vpop.permute.xlu0 %2360
        %vm2362 = vcmask 736256
        %v2363 = vsel %vm2362, %v2355, %v2357
        %v2364 = vsel %vm2362, %v2357, %v2359
        %v2365 = vsel %vm2362, %v2359, %v2361
        %v2370 = vadd.f32 %v2346, %v2363
        %v2371 = vadd.f32 %v2347, %v2364
        %v2372 = vadd.f32 %v2348, %v2365
        %v2373 = vadd.f32 %v2349, %v2361
        %2375 = vset.pattern.permute.xlu0 0
        %2376 = vperm.xlu0 %2375, %v255
        %v2377 = vpop.permute.xlu0 %2376
        %v2379 = vlaneseq
        %v2380 = vshrl.u32 %v2379, 7
        %v2381 = vsub.s32 0, %v2380
        %v2382 = vrot.slane %v2377, %v2381
        %v2383 = vadd.f32 %v2370, %v2382
        %v2384 = vadd.f32 %v2371, %v2382
        %v2385 = vadd.f32 %v2372, %v2382
        %v2386 = vadd.f32 %v2373, %v2382
        %v2387 = vtanh.pop %v2383
        %v2388 = vtanh.pop %v2384
        %v2389 = vtanh.pop %v2385
        %v2390 = vtanh.pop %v2386
        %v2395 = vcombine.low %v2387, %v2388
        %v2396 = vcombine.low %v2389, %v2390
        %v2398 = vunpack.c.l.s4 1966171168
        %v2399 = vunpack.c.0.s8 %v2398
        %v2400 = vlaneseq
        %v2401 = vshrl.u32 %v2400, 7
        %v2402 = vsub.s32 %v2399, %v2401
        %v2403 = vrot.slane %v2395, %v2402
        %v2405 = vunpack.c.l.s4 1966171168
        %v2406 = vunpack.c.0.s8 %v2405
        %v2407 = vlaneseq
        %v2408 = vshrl.u32 %v2407, 7
        %v2409 = vsub.s32 %v2406, %v2408
        %v2410 = vrot.slane %v2396, %v2409
        %v2411 = vcombine.low %v2403, %v2410
        %v2413 = vunpack.c.l.s4 1966171168
        %v2414 = vunpack.c.0.s8 %v2413
        %v2415 = vlaneseq
        %v2416 = vshrl.u32 %v2415, 7
        %v2417 = vsub.s32 %v2414, %v2416
        %v2418 = vrot.slane %v2411, %v2417
        %2419 = vrot.lane.b32.xlu0 %v2418, 83
        %v2420 = vpop.permute.xlu0 %2419
        %v2421 = vrot.slane %v2420, 1
        %v2422 = vsel %vm463, %v2420, %v2421
        %v2424 = vlaneseq
        %vm2425 = vcmp.ge.s32.totalorder %v2424, 0
        %vm2426 = vcmp.lt.s32.totalorder %v2424, 384
        %vm2427 = vmand %vm2425, %vm2426
        %2428 = vst.msk [vmem:[%s246] sm:$0x7] %vm2427, %v2422
        %s2429 = sand.u32 %s161, 1
        %s2430 = scalar_lea.sflag [#allocation4], %s2429
        %s2431 = sand.u32 %s161, 1
        %s2432 = smul.addr %s2431, 3
        %s2433 = scalar_lea.vmem [#allocation3], %s2432
        // Predicated region
        $region45: #{tpu_custom_call.1} parent=43 // pred_check
          %p2434 = pneg %p171
        $region46: #{tpu_custom_call.1} parent=43 // pred_check_branch
          %2436 = sbr.rel (%p2434) target = $region48
        $region47: #{tpu_custom_call.1} parent=43 // pred_region
          %s2438 = ssub.s32 48, 48
          %2439 = vsyncadd %s2430, %s2438
          %s2440 = smul.addr %s22, 3
          %s2441 = smul.addr %s2440, 16
          %s2442 = scalar_lea.hbm %s6, %s2441
          %s2444 = sshll.u32 %s2433, 4
          %s2445 = int_to_ptr.vmem [resolvable:$true] %s2444
          %2447 = dma.vmem_to_hbm [thread:$0]  %s2445, 48, %s2442, %s2430
        $region48: #{tpu_custom_call.1} parent=43 // pred_fallthru
          _
      $region44: #{tpu_custom_call.1} parent=5 // pred_fallthru
        _
      %p2448 = scmp.le.s32.totalorder 2, %s17
      // Predicated region
      $region49: #{tpu_custom_call.1} parent=5 // pred_check
        %p2449 = pneg %p2448
      $region50: #{tpu_custom_call.1} parent=5 // pred_check_branch
        %2451 = sbr.rel (%p2449) target = $region52
      $region51: #{tpu_custom_call.1} parent=5 // pred_region
        %s2452 = ssub.s32 %s17, 2
        // Predicated region
        $region53: #{tpu_custom_call.1} parent=51 // pred_check
          %p2453 = pneg %p177
        $region54: #{tpu_custom_call.1} parent=51 // pred_check_branch
          %2455 = sbr.rel (%p2453) target = $region56
        $region55: #{tpu_custom_call.1} parent=51 // pred_region
          %s2456 = sand.u32 %s162, 1
          %s2457 = scalar_lea.sflag [#allocation4], %s2456
          %s2458 = sand.u32 %s162, 1
          %s2459 = smul.addr %s2458, 3
          %s2460 = scalar_lea.vmem [#allocation3], %s2459
          %2461 = dma.done %s2457, 48
        $region56: #{tpu_custom_call.1} parent=51 // pred_fallthru
          _
      $region52: #{tpu_custom_call.1} parent=5 // pred_fallthru
        _
    $region6: #{tpu_custom_call.1} parent=1 // loop_footer
      %s21 = sadd.s32 1, %s17
    $region7: #{tpu_custom_call.1} parent=1 // loop_footer_branch
      %16 = sbr.rel target = $region3
    $region8: #{tpu_custom_call.1} parent=1 // loop_exit
      _
    %2462 = vsyncpa [#allocation4], 1
    %s2463 = scalar_lea.sflag [#allocation4], 1
    %2464 = vsyncpa %s2463, 1

</llo_original>
